<compile_context>
chip_gen: v7x
topology: tpu7x:2x2x1
jax: 0.10.0
libtpu: 0.0.40
codegen_flags: <defaults>
</compile_context>

<pallas_src>
import math

import jax
import jax.numpy as jnp
from jax.experimental import pallas as pl
from jax.experimental.pallas import tpu as pltpu

LANES = 128      # lane width of a vreg (one sample per lane element)
SUBLANES = 8     # tile row-count must be a multiple of 8 (sublane granularity)
TR_MAX = 256     # max rows per grid step: VALU-bound kernel, small tiles are
                 # enough to amortize the ~0.35 us per-step overhead (<2%)
MIN_STEPS = 4    # aim for >=4 grid steps: megacore sharding on v7x (2 TCs)
                 # plus DMA/compute pipelining on all generations


def _cdiv(a, b):
    return -(-a // b)


def mlp_kernel(x_ref, y_ref, w1_ref, b1_ref, w2_ref, b2_ref, w3_ref, b3_ref,
               out_ref):
    """Whole 2->8->16->1 MLP on one lane-major (tr, 128) sample tile.

    x_ref / y_ref / out_ref are (tr, 128) f32 VMEM tiles; all weights/biases
    are tiny SMEM arrays read as scalars and broadcast into VPU ops (tanh on
    the EUP).  j-outer accumulation keeps only 16 accumulators + x + y + the
    current h1 live per chunk -- no hidden-layer temporaries in VMEM.
    """
    x = x_ref[...]
    y = y_ref[...]

    def hidden(j):
        # Layer 1: Linear(2, 8) + Tanh, one hidden channel at a time.
        return jnp.tanh(x * w1_ref[0, j] + y * w1_ref[1, j] + b1_ref[j])

    # Layer 2: Linear(8, 16).  acc[k] = b2[k] + sum_j h1_j * w2[j, k]
    h1 = hidden(0)
    acc = [b2_ref[k] + h1 * w2_ref[0, k] for k in range(16)]
    for j in range(1, 8):
        h1 = hidden(j)
        for k in range(16):
            acc[k] = acc[k] + h1 * w2_ref[j, k]

    # Layer 3: ReLU then Linear(16, 1).
    out = jnp.maximum(acc[0], 0.0) * w3_ref[0]
    for k in range(1, 16):
        out = out + jnp.maximum(acc[k], 0.0) * w3_ref[k]
    out_ref[...] = out + b3_ref[0]


def _tile_rows(R):
    """Rows per grid step: multiple of SUBLANES, <= TR_MAX, targeting at
    least MIN_STEPS steps and minimal row padding (balanced split of R)."""
    steps = max(MIN_STEPS, _cdiv(R, TR_MAX))
    tr = _cdiv(R, steps)
    tr = max(SUBLANES, _cdiv(tr, SUBLANES) * SUBLANES)
    return tr


def init_params(key):
    """Deterministic params mimicking PyTorch nn.Linear default init."""
    dims = [(2, 8), (8, 16), (16, 1)]  # (fan_in, fan_out)
    params = []
    for fan_in, fan_out in dims:
        key, kw, kb = jax.random.split(key, 3)
        bound = 1.0 / math.sqrt(fan_in)
        # PyTorch stores weight as (out, in); forward does x @ W.T + b
        W = jax.random.uniform(kw, (fan_out, fan_in), minval=-bound,
                               maxval=bound, dtype=jnp.float32)
        b = jax.random.uniform(kb, (fan_out,), minval=-bound, maxval=bound,
                               dtype=jnp.float32)
        params.append((W, b))
    return params


def neural_network_forward(x, y, params):
    if x.ndim != y.ndim:
        raise AssertionError(
            f"x and y must have the same number of dimensions, but got "
            f"x.dim() == {x.ndim} and y.dim() == {y.ndim}")

    lead = x.shape
    M = int(math.prod(lead)) if lead else 1

    # Lane-major layout: one sample per lane element, rows of 128 samples.
    R = _cdiv(M, LANES)
    tr = _tile_rows(R)
    Rp = _cdiv(R, tr) * tr
    pad = Rp * LANES - M

    xf = x.reshape(-1).astype(jnp.float32)
    yf = y.reshape(-1).astype(jnp.float32)
    if pad:
        # Only the ragged tail is padded (balanced tr keeps Rp close to R);
        # aligned inputs skip the extra HBM pad/copy pass entirely.
        xf = jnp.pad(xf, (0, pad))
        yf = jnp.pad(yf, (0, pad))
    xf = xf.reshape(Rp, LANES)
    yf = yf.reshape(Rp, LANES)

    (W1, b1), (W2, b2), (W3, b3) = params
    # kernel wants W as (in, out) with scalar indexing; PyTorch stores (out, in)
    w1 = W1.T.astype(jnp.float32)                # (2, 8)
    w2 = W2.T.astype(jnp.float32)                # (8, 16)
    w3 = W3.reshape(-1).astype(jnp.float32)      # (16,)  == W3[0, :]
    b1f = b1.astype(jnp.float32)                 # (8,)
    b2f = b2.astype(jnp.float32)                 # (16,)
    b3f = b3.reshape(-1).astype(jnp.float32)     # (1,)

    smem = pl.BlockSpec(memory_space=pltpu.MemorySpace.SMEM)
    data = pl.BlockSpec((tr, LANES), lambda i: (i, 0))

    n_elem = Rp * LANES
    cost = pl.CostEstimate(flops=336 * n_elem,
                           transcendentals=8 * n_elem,
                           bytes_accessed=12 * n_elem)

    out = pl.pallas_call(
        mlp_kernel,
        out_shape=jax.ShapeDtypeStruct((Rp, LANES), jnp.float32),
        grid=(Rp // tr,),
        in_specs=[data, data, smem, smem, smem, smem, smem, smem],
        out_specs=data,
        compiler_params=pltpu.CompilerParams(
            dimension_semantics=("parallel",)),
        cost_estimate=cost,
    )(xf, yf, w1, b1f, w2, b2f, w3, b3f)

    logits = out.reshape(-1)[:M].reshape(lead + (1,))
    return jnp.squeeze(logits)   # torch .squeeze(): drop all size-1 dims


def _reference(x, y, params):
    (W1, b1), (W2, b2), (W3, b3) = params
    xy = jnp.stack((x, y), axis=x.ndim)
    h = jnp.tanh(xy @ W1.T + b1)
    h = jnp.maximum(h @ W2.T + b2, 0.0)
    return jnp.squeeze(h @ W3.T + b3)


if __name__ == "__main__":
    key = jax.random.PRNGKey(0)
    kp, kx, ky, kx2, ky2 = jax.random.split(key, 5)

    params = init_params(kp)

    # small shapes consistent with the module: x, y are (B, S) coordinate grids
    B, S = 2, 8
    x = jax.random.normal(kx, (B, S), dtype=jnp.float32)
    y = jax.random.normal(ky, (B, S), dtype=jnp.float32)

    logits = neural_network_forward(x, y, params)
    jax.block_until_ready(logits)
    assert logits.shape == (B, S), logits.shape
    assert jnp.allclose(logits, _reference(x, y, params), atol=1e-5, rtol=1e-5)

    # ragged, larger batch: exercises the multi-step grid (pipelining /
    # megacore path) and the tail-padding logic.
    M = 5000
    xl = jax.random.normal(kx2, (M,), dtype=jnp.float32)
    yl = jax.random.normal(ky2, (M,), dtype=jnp.float32)
    out_l = neural_network_forward(xl, yl, params)
    jax.block_until_ready(out_l)
    assert out_l.shape == (M,), out_l.shape
    assert jnp.allclose(out_l, _reference(xl, yl, params), atol=1e-5, rtol=1e-5)

    print("KERNEL_OK")
</pallas_src>

<mosaic_0001>
module attributes {stable_mosaic.version = 11 : i64} {
  func.func @mlp_kernel(%arg0: i32, %arg1: memref<8x128xf32, #tpu.memory_space<vmem>>, %arg2: memref<8x128xf32, #tpu.memory_space<vmem>>, %arg3: memref<2x8xf32, #tpu.memory_space<smem>>, %arg4: memref<8xf32, #tpu.memory_space<smem>>, %arg5: memref<8x16xf32, #tpu.memory_space<smem>>, %arg6: memref<16xf32, #tpu.memory_space<smem>>, %arg7: memref<16xf32, #tpu.memory_space<smem>>, %arg8: memref<1xf32, #tpu.memory_space<smem>>, %arg9: memref<8x128xf32, #tpu.memory_space<vmem>>) attributes {dimension_semantics = [#tpu.dimension_semantics<parallel>], iteration_bounds = array<i64: 1>, scalar_prefetch = 0 : i64, scratch_operands = 0 : i64, tpu.core_type = #tpu.core_type<tc>, window_params = [{transform_indices = @transform_0, window_bounds = array<i64: 8, 128>}, {transform_indices = @transform_1, window_bounds = array<i64: 8, 128>}, {transform_indices = @transform_2, window_bounds = array<i64: 2, 8>}, {transform_indices = @transform_3, window_bounds = array<i64: 8>}, {transform_indices = @transform_4, window_bounds = array<i64: 8, 16>}, {transform_indices = @transform_5, window_bounds = array<i64: 16>}, {transform_indices = @transform_6, window_bounds = array<i64: 16>}, {transform_indices = @transform_7, window_bounds = array<i64: 1>}, {transform_indices = @transform_8, window_bounds = array<i64: 8, 128>}]} {
    %c0 = arith.constant 0 : index
    %c0_0 = arith.constant 0 : index
    %0 = vector.load %arg1[%c0, %c0_0] : memref<8x128xf32, #tpu.memory_space<vmem>>, vector<8x128xf32>
    %c0_1 = arith.constant 0 : index
    %c0_2 = arith.constant 0 : index
    %1 = vector.load %arg2[%c0_1, %c0_2] : memref<8x128xf32, #tpu.memory_space<vmem>>, vector<8x128xf32>
    %c0_3 = arith.constant 0 : index
    %c0_4 = arith.constant 0 : index
    %2 = memref.load %arg3[%c0_3, %c0_4] : memref<2x8xf32, #tpu.memory_space<smem>>
    %3 = vector.broadcast %2 : f32 to vector<8x128xf32>
    %4 = arith.mulf %0, %3 : vector<8x128xf32>
    %c1 = arith.constant 1 : index
    %c0_5 = arith.constant 0 : index
    %5 = memref.load %arg3[%c1, %c0_5] : memref<2x8xf32, #tpu.memory_space<smem>>
    %6 = vector.broadcast %5 : f32 to vector<8x128xf32>
    %7 = arith.mulf %1, %6 : vector<8x128xf32>
    %8 = arith.addf %4, %7 : vector<8x128xf32>
    %c0_6 = arith.constant 0 : index
    %9 = memref.load %arg4[%c0_6] : memref<8xf32, #tpu.memory_space<smem>>
    %10 = vector.broadcast %9 : f32 to vector<8x128xf32>
    %11 = arith.addf %8, %10 : vector<8x128xf32>
    %12 = math.tanh %11 : vector<8x128xf32>
    %c0_7 = arith.constant 0 : index
    %13 = memref.load %arg6[%c0_7] : memref<16xf32, #tpu.memory_space<smem>>
    %c0_8 = arith.constant 0 : index
    %c0_9 = arith.constant 0 : index
    %14 = memref.load %arg5[%c0_8, %c0_9] : memref<8x16xf32, #tpu.memory_space<smem>>
    %15 = vector.broadcast %14 : f32 to vector<8x128xf32>
    %16 = arith.mulf %12, %15 : vector<8x128xf32>
    %17 = vector.broadcast %13 : f32 to vector<8x128xf32>
    %18 = arith.addf %17, %16 : vector<8x128xf32>
    %c1_10 = arith.constant 1 : index
    %19 = memref.load %arg6[%c1_10] : memref<16xf32, #tpu.memory_space<smem>>
    %c0_11 = arith.constant 0 : index
    %c1_12 = arith.constant 1 : index
    %20 = memref.load %arg5[%c0_11, %c1_12] : memref<8x16xf32, #tpu.memory_space<smem>>
    %21 = vector.broadcast %20 : f32 to vector<8x128xf32>
    %22 = arith.mulf %12, %21 : vector<8x128xf32>
    %23 = vector.broadcast %19 : f32 to vector<8x128xf32>
    %24 = arith.addf %23, %22 : vector<8x128xf32>
    %c2 = arith.constant 2 : index
    %25 = memref.load %arg6[%c2] : memref<16xf32, #tpu.memory_space<smem>>
    %c0_13 = arith.constant 0 : index
    %c2_14 = arith.constant 2 : index
    %26 = memref.load %arg5[%c0_13, %c2_14] : memref<8x16xf32, #tpu.memory_space<smem>>
    %27 = vector.broadcast %26 : f32 to vector<8x128xf32>
    %28 = arith.mulf %12, %27 : vector<8x128xf32>
    %29 = vector.broadcast %25 : f32 to vector<8x128xf32>
    %30 = arith.addf %29, %28 : vector<8x128xf32>
    %c3 = arith.constant 3 : index
    %31 = memref.load %arg6[%c3] : memref<16xf32, #tpu.memory_space<smem>>
    %c0_15 = arith.constant 0 : index
    %c3_16 = arith.constant 3 : index
    %32 = memref.load %arg5[%c0_15, %c3_16] : memref<8x16xf32, #tpu.memory_space<smem>>
    %33 = vector.broadcast %32 : f32 to vector<8x128xf32>
    %34 = arith.mulf %12, %33 : vector<8x128xf32>
    %35 = vector.broadcast %31 : f32 to vector<8x128xf32>
    %36 = arith.addf %35, %34 : vector<8x128xf32>
    %c4 = arith.constant 4 : index
    %37 = memref.load %arg6[%c4] : memref<16xf32, #tpu.memory_space<smem>>
    %c0_17 = arith.constant 0 : index
    %c4_18 = arith.constant 4 : index
    %38 = memref.load %arg5[%c0_17, %c4_18] : memref<8x16xf32, #tpu.memory_space<smem>>
    %39 = vector.broadcast %38 : f32 to vector<8x128xf32>
    %40 = arith.mulf %12, %39 : vector<8x128xf32>
    %41 = vector.broadcast %37 : f32 to vector<8x128xf32>
    %42 = arith.addf %41, %40 : vector<8x128xf32>
    %c5 = arith.constant 5 : index
    %43 = memref.load %arg6[%c5] : memref<16xf32, #tpu.memory_space<smem>>
    %c0_19 = arith.constant 0 : index
    %c5_20 = arith.constant 5 : index
    %44 = memref.load %arg5[%c0_19, %c5_20] : memref<8x16xf32, #tpu.memory_space<smem>>
    %45 = vector.broadcast %44 : f32 to vector<8x128xf32>
    %46 = arith.mulf %12, %45 : vector<8x128xf32>
    %47 = vector.broadcast %43 : f32 to vector<8x128xf32>
    %48 = arith.addf %47, %46 : vector<8x128xf32>
    %c6 = arith.constant 6 : index
    %49 = memref.load %arg6[%c6] : memref<16xf32, #tpu.memory_space<smem>>
    %c0_21 = arith.constant 0 : index
    %c6_22 = arith.constant 6 : index
    %50 = memref.load %arg5[%c0_21, %c6_22] : memref<8x16xf32, #tpu.memory_space<smem>>
    %51 = vector.broadcast %50 : f32 to vector<8x128xf32>
    %52 = arith.mulf %12, %51 : vector<8x128xf32>
    %53 = vector.broadcast %49 : f32 to vector<8x128xf32>
    %54 = arith.addf %53, %52 : vector<8x128xf32>
    %c7 = arith.constant 7 : index
    %55 = memref.load %arg6[%c7] : memref<16xf32, #tpu.memory_space<smem>>
    %c0_23 = arith.constant 0 : index
    %c7_24 = arith.constant 7 : index
    %56 = memref.load %arg5[%c0_23, %c7_24] : memref<8x16xf32, #tpu.memory_space<smem>>
    %57 = vector.broadcast %56 : f32 to vector<8x128xf32>
    %58 = arith.mulf %12, %57 : vector<8x128xf32>
    %59 = vector.broadcast %55 : f32 to vector<8x128xf32>
    %60 = arith.addf %59, %58 : vector<8x128xf32>
    %c8 = arith.constant 8 : index
    %61 = memref.load %arg6[%c8] : memref<16xf32, #tpu.memory_space<smem>>
    %c0_25 = arith.constant 0 : index
    %c8_26 = arith.constant 8 : index
    %62 = memref.load %arg5[%c0_25, %c8_26] : memref<8x16xf32, #tpu.memory_space<smem>>
    %63 = vector.broadcast %62 : f32 to vector<8x128xf32>
    %64 = arith.mulf %12, %63 : vector<8x128xf32>
    %65 = vector.broadcast %61 : f32 to vector<8x128xf32>
    %66 = arith.addf %65, %64 : vector<8x128xf32>
    %c9 = arith.constant 9 : index
    %67 = memref.load %arg6[%c9] : memref<16xf32, #tpu.memory_space<smem>>
    %c0_27 = arith.constant 0 : index
    %c9_28 = arith.constant 9 : index
    %68 = memref.load %arg5[%c0_27, %c9_28] : memref<8x16xf32, #tpu.memory_space<smem>>
    %69 = vector.broadcast %68 : f32 to vector<8x128xf32>
    %70 = arith.mulf %12, %69 : vector<8x128xf32>
    %71 = vector.broadcast %67 : f32 to vector<8x128xf32>
    %72 = arith.addf %71, %70 : vector<8x128xf32>
    %c10 = arith.constant 10 : index
    %73 = memref.load %arg6[%c10] : memref<16xf32, #tpu.memory_space<smem>>
    %c0_29 = arith.constant 0 : index
    %c10_30 = arith.constant 10 : index
    %74 = memref.load %arg5[%c0_29, %c10_30] : memref<8x16xf32, #tpu.memory_space<smem>>
    %75 = vector.broadcast %74 : f32 to vector<8x128xf32>
    %76 = arith.mulf %12, %75 : vector<8x128xf32>
    %77 = vector.broadcast %73 : f32 to vector<8x128xf32>
    %78 = arith.addf %77, %76 : vector<8x128xf32>
    %c11 = arith.constant 11 : index
    %79 = memref.load %arg6[%c11] : memref<16xf32, #tpu.memory_space<smem>>
    %c0_31 = arith.constant 0 : index
    %c11_32 = arith.constant 11 : index
    %80 = memref.load %arg5[%c0_31, %c11_32] : memref<8x16xf32, #tpu.memory_space<smem>>
    %81 = vector.broadcast %80 : f32 to vector<8x128xf32>
    %82 = arith.mulf %12, %81 : vector<8x128xf32>
    %83 = vector.broadcast %79 : f32 to vector<8x128xf32>
    %84 = arith.addf %83, %82 : vector<8x128xf32>
    %c12 = arith.constant 12 : index
    %85 = memref.load %arg6[%c12] : memref<16xf32, #tpu.memory_space<smem>>
    %c0_33 = arith.constant 0 : index
    %c12_34 = arith.constant 12 : index
    %86 = memref.load %arg5[%c0_33, %c12_34] : memref<8x16xf32, #tpu.memory_space<smem>>
    %87 = vector.broadcast %86 : f32 to vector<8x128xf32>
    %88 = arith.mulf %12, %87 : vector<8x128xf32>
    %89 = vector.broadcast %85 : f32 to vector<8x128xf32>
    %90 = arith.addf %89, %88 : vector<8x128xf32>
    %c13 = arith.constant 13 : index
    %91 = memref.load %arg6[%c13] : memref<16xf32, #tpu.memory_space<smem>>
    %c0_35 = arith.constant 0 : index
    %c13_36 = arith.constant 13 : index
    %92 = memref.load %arg5[%c0_35, %c13_36] : memref<8x16xf32, #tpu.memory_space<smem>>
    %93 = vector.broadcast %92 : f32 to vector<8x128xf32>
    %94 = arith.mulf %12, %93 : vector<8x128xf32>
    %95 = vector.broadcast %91 : f32 to vector<8x128xf32>
    %96 = arith.addf %95, %94 : vector<8x128xf32>
    %c14 = arith.constant 14 : index
    %97 = memref.load %arg6[%c14] : memref<16xf32, #tpu.memory_space<smem>>
    %c0_37 = arith.constant 0 : index
    %c14_38 = arith.constant 14 : index
    %98 = memref.load %arg5[%c0_37, %c14_38] : memref<8x16xf32, #tpu.memory_space<smem>>
    %99 = vector.broadcast %98 : f32 to vector<8x128xf32>
    %100 = arith.mulf %12, %99 : vector<8x128xf32>
    %101 = vector.broadcast %97 : f32 to vector<8x128xf32>
    %102 = arith.addf %101, %100 : vector<8x128xf32>
    %c15 = arith.constant 15 : index
    %103 = memref.load %arg6[%c15] : memref<16xf32, #tpu.memory_space<smem>>
    %c0_39 = arith.constant 0 : index
    %c15_40 = arith.constant 15 : index
    %104 = memref.load %arg5[%c0_39, %c15_40] : memref<8x16xf32, #tpu.memory_space<smem>>
    %105 = vector.broadcast %104 : f32 to vector<8x128xf32>
    %106 = arith.mulf %12, %105 : vector<8x128xf32>
    %107 = vector.broadcast %103 : f32 to vector<8x128xf32>
    %108 = arith.addf %107, %106 : vector<8x128xf32>
    %c0_41 = arith.constant 0 : index
    %c1_42 = arith.constant 1 : index
    %109 = memref.load %arg3[%c0_41, %c1_42] : memref<2x8xf32, #tpu.memory_space<smem>>
    %110 = vector.broadcast %109 : f32 to vector<8x128xf32>
    %111 = arith.mulf %0, %110 : vector<8x128xf32>
    %c1_43 = arith.constant 1 : index
    %c1_44 = arith.constant 1 : index
    %112 = memref.load %arg3[%c1_43, %c1_44] : memref<2x8xf32, #tpu.memory_space<smem>>
    %113 = vector.broadcast %112 : f32 to vector<8x128xf32>
    %114 = arith.mulf %1, %113 : vector<8x128xf32>
    %115 = arith.addf %111, %114 : vector<8x128xf32>
    %c1_45 = arith.constant 1 : index
    %116 = memref.load %arg4[%c1_45] : memref<8xf32, #tpu.memory_space<smem>>
    %117 = vector.broadcast %116 : f32 to vector<8x128xf32>
    %118 = arith.addf %115, %117 : vector<8x128xf32>
    %119 = math.tanh %118 : vector<8x128xf32>
    %c1_46 = arith.constant 1 : index
    %c0_47 = arith.constant 0 : index
    %120 = memref.load %arg5[%c1_46, %c0_47] : memref<8x16xf32, #tpu.memory_space<smem>>
    %121 = vector.broadcast %120 : f32 to vector<8x128xf32>
    %122 = arith.mulf %119, %121 : vector<8x128xf32>
    %123 = arith.addf %18, %122 : vector<8x128xf32>
    %c1_48 = arith.constant 1 : index
    %c1_49 = arith.constant 1 : index
    %124 = memref.load %arg5[%c1_48, %c1_49] : memref<8x16xf32, #tpu.memory_space<smem>>
    %125 = vector.broadcast %124 : f32 to vector<8x128xf32>
    %126 = arith.mulf %119, %125 : vector<8x128xf32>
    %127 = arith.addf %24, %126 : vector<8x128xf32>
    %c1_50 = arith.constant 1 : index
    %c2_51 = arith.constant 2 : index
    %128 = memref.load %arg5[%c1_50, %c2_51] : memref<8x16xf32, #tpu.memory_space<smem>>
    %129 = vector.broadcast %128 : f32 to vector<8x128xf32>
    %130 = arith.mulf %119, %129 : vector<8x128xf32>
    %131 = arith.addf %30, %130 : vector<8x128xf32>
    %c1_52 = arith.constant 1 : index
    %c3_53 = arith.constant 3 : index
    %132 = memref.load %arg5[%c1_52, %c3_53] : memref<8x16xf32, #tpu.memory_space<smem>>
    %133 = vector.broadcast %132 : f32 to vector<8x128xf32>
    %134 = arith.mulf %119, %133 : vector<8x128xf32>
    %135 = arith.addf %36, %134 : vector<8x128xf32>
    %c1_54 = arith.constant 1 : index
    %c4_55 = arith.constant 4 : index
    %136 = memref.load %arg5[%c1_54, %c4_55] : memref<8x16xf32, #tpu.memory_space<smem>>
    %137 = vector.broadcast %136 : f32 to vector<8x128xf32>
    %138 = arith.mulf %119, %137 : vector<8x128xf32>
    %139 = arith.addf %42, %138 : vector<8x128xf32>
    %c1_56 = arith.constant 1 : index
    %c5_57 = arith.constant 5 : index
    %140 = memref.load %arg5[%c1_56, %c5_57] : memref<8x16xf32, #tpu.memory_space<smem>>
    %141 = vector.broadcast %140 : f32 to vector<8x128xf32>
    %142 = arith.mulf %119, %141 : vector<8x128xf32>
    %143 = arith.addf %48, %142 : vector<8x128xf32>
    %c1_58 = arith.constant 1 : index
    %c6_59 = arith.constant 6 : index
    %144 = memref.load %arg5[%c1_58, %c6_59] : memref<8x16xf32, #tpu.memory_space<smem>>
    %145 = vector.broadcast %144 : f32 to vector<8x128xf32>
    %146 = arith.mulf %119, %145 : vector<8x128xf32>
    %147 = arith.addf %54, %146 : vector<8x128xf32>
    %c1_60 = arith.constant 1 : index
    %c7_61 = arith.constant 7 : index
    %148 = memref.load %arg5[%c1_60, %c7_61] : memref<8x16xf32, #tpu.memory_space<smem>>
    %149 = vector.broadcast %148 : f32 to vector<8x128xf32>
    %150 = arith.mulf %119, %149 : vector<8x128xf32>
    %151 = arith.addf %60, %150 : vector<8x128xf32>
    %c1_62 = arith.constant 1 : index
    %c8_63 = arith.constant 8 : index
    %152 = memref.load %arg5[%c1_62, %c8_63] : memref<8x16xf32, #tpu.memory_space<smem>>
    %153 = vector.broadcast %152 : f32 to vector<8x128xf32>
    %154 = arith.mulf %119, %153 : vector<8x128xf32>
    %155 = arith.addf %66, %154 : vector<8x128xf32>
    %c1_64 = arith.constant 1 : index
    %c9_65 = arith.constant 9 : index
    %156 = memref.load %arg5[%c1_64, %c9_65] : memref<8x16xf32, #tpu.memory_space<smem>>
    %157 = vector.broadcast %156 : f32 to vector<8x128xf32>
    %158 = arith.mulf %119, %157 : vector<8x128xf32>
    %159 = arith.addf %72, %158 : vector<8x128xf32>
    %c1_66 = arith.constant 1 : index
    %c10_67 = arith.constant 10 : index
    %160 = memref.load %arg5[%c1_66, %c10_67] : memref<8x16xf32, #tpu.memory_space<smem>>
    %161 = vector.broadcast %160 : f32 to vector<8x128xf32>
    %162 = arith.mulf %119, %161 : vector<8x128xf32>
    %163 = arith.addf %78, %162 : vector<8x128xf32>
    %c1_68 = arith.constant 1 : index
    %c11_69 = arith.constant 11 : index
    %164 = memref.load %arg5[%c1_68, %c11_69] : memref<8x16xf32, #tpu.memory_space<smem>>
    %165 = vector.broadcast %164 : f32 to vector<8x128xf32>
    %166 = arith.mulf %119, %165 : vector<8x128xf32>
    %167 = arith.addf %84, %166 : vector<8x128xf32>
    %c1_70 = arith.constant 1 : index
    %c12_71 = arith.constant 12 : index
    %168 = memref.load %arg5[%c1_70, %c12_71] : memref<8x16xf32, #tpu.memory_space<smem>>
    %169 = vector.broadcast %168 : f32 to vector<8x128xf32>
    %170 = arith.mulf %119, %169 : vector<8x128xf32>
    %171 = arith.addf %90, %170 : vector<8x128xf32>
    %c1_72 = arith.constant 1 : index
    %c13_73 = arith.constant 13 : index
    %172 = memref.load %arg5[%c1_72, %c13_73] : memref<8x16xf32, #tpu.memory_space<smem>>
    %173 = vector.broadcast %172 : f32 to vector<8x128xf32>
    %174 = arith.mulf %119, %173 : vector<8x128xf32>
    %175 = arith.addf %96, %174 : vector<8x128xf32>
    %c1_74 = arith.constant 1 : index
    %c14_75 = arith.constant 14 : index
    %176 = memref.load %arg5[%c1_74, %c14_75] : memref<8x16xf32, #tpu.memory_space<smem>>
    %177 = vector.broadcast %176 : f32 to vector<8x128xf32>
    %178 = arith.mulf %119, %177 : vector<8x128xf32>
    %179 = arith.addf %102, %178 : vector<8x128xf32>
    %c1_76 = arith.constant 1 : index
    %c15_77 = arith.constant 15 : index
    %180 = memref.load %arg5[%c1_76, %c15_77] : memref<8x16xf32, #tpu.memory_space<smem>>
    %181 = vector.broadcast %180 : f32 to vector<8x128xf32>
    %182 = arith.mulf %119, %181 : vector<8x128xf32>
    %183 = arith.addf %108, %182 : vector<8x128xf32>
    %c0_78 = arith.constant 0 : index
    %c2_79 = arith.constant 2 : index
    %184 = memref.load %arg3[%c0_78, %c2_79] : memref<2x8xf32, #tpu.memory_space<smem>>
    %185 = vector.broadcast %184 : f32 to vector<8x128xf32>
    %186 = arith.mulf %0, %185 : vector<8x128xf32>
    %c1_80 = arith.constant 1 : index
    %c2_81 = arith.constant 2 : index
    %187 = memref.load %arg3[%c1_80, %c2_81] : memref<2x8xf32, #tpu.memory_space<smem>>
    %188 = vector.broadcast %187 : f32 to vector<8x128xf32>
    %189 = arith.mulf %1, %188 : vector<8x128xf32>
    %190 = arith.addf %186, %189 : vector<8x128xf32>
    %c2_82 = arith.constant 2 : index
    %191 = memref.load %arg4[%c2_82] : memref<8xf32, #tpu.memory_space<smem>>
    %192 = vector.broadcast %191 : f32 to vector<8x128xf32>
    %193 = arith.addf %190, %192 : vector<8x128xf32>
    %194 = math.tanh %193 : vector<8x128xf32>
    %c2_83 = arith.constant 2 : index
    %c0_84 = arith.constant 0 : index
    %195 = memref.load %arg5[%c2_83, %c0_84] : memref<8x16xf32, #tpu.memory_space<smem>>
    %196 = vector.broadcast %195 : f32 to vector<8x128xf32>
    %197 = arith.mulf %194, %196 : vector<8x128xf32>
    %198 = arith.addf %123, %197 : vector<8x128xf32>
    %c2_85 = arith.constant 2 : index
    %c1_86 = arith.constant 1 : index
    %199 = memref.load %arg5[%c2_85, %c1_86] : memref<8x16xf32, #tpu.memory_space<smem>>
    %200 = vector.broadcast %199 : f32 to vector<8x128xf32>
    %201 = arith.mulf %194, %200 : vector<8x128xf32>
    %202 = arith.addf %127, %201 : vector<8x128xf32>
    %c2_87 = arith.constant 2 : index
    %c2_88 = arith.constant 2 : index
    %203 = memref.load %arg5[%c2_87, %c2_88] : memref<8x16xf32, #tpu.memory_space<smem>>
    %204 = vector.broadcast %203 : f32 to vector<8x128xf32>
    %205 = arith.mulf %194, %204 : vector<8x128xf32>
    %206 = arith.addf %131, %205 : vector<8x128xf32>
    %c2_89 = arith.constant 2 : index
    %c3_90 = arith.constant 3 : index
    %207 = memref.load %arg5[%c2_89, %c3_90] : memref<8x16xf32, #tpu.memory_space<smem>>
    %208 = vector.broadcast %207 : f32 to vector<8x128xf32>
    %209 = arith.mulf %194, %208 : vector<8x128xf32>
    %210 = arith.addf %135, %209 : vector<8x128xf32>
    %c2_91 = arith.constant 2 : index
    %c4_92 = arith.constant 4 : index
    %211 = memref.load %arg5[%c2_91, %c4_92] : memref<8x16xf32, #tpu.memory_space<smem>>
    %212 = vector.broadcast %211 : f32 to vector<8x128xf32>
    %213 = arith.mulf %194, %212 : vector<8x128xf32>
    %214 = arith.addf %139, %213 : vector<8x128xf32>
    %c2_93 = arith.constant 2 : index
    %c5_94 = arith.constant 5 : index
    %215 = memref.load %arg5[%c2_93, %c5_94] : memref<8x16xf32, #tpu.memory_space<smem>>
    %216 = vector.broadcast %215 : f32 to vector<8x128xf32>
    %217 = arith.mulf %194, %216 : vector<8x128xf32>
    %218 = arith.addf %143, %217 : vector<8x128xf32>
    %c2_95 = arith.constant 2 : index
    %c6_96 = arith.constant 6 : index
    %219 = memref.load %arg5[%c2_95, %c6_96] : memref<8x16xf32, #tpu.memory_space<smem>>
    %220 = vector.broadcast %219 : f32 to vector<8x128xf32>
    %221 = arith.mulf %194, %220 : vector<8x128xf32>
    %222 = arith.addf %147, %221 : vector<8x128xf32>
    %c2_97 = arith.constant 2 : index
    %c7_98 = arith.constant 7 : index
    %223 = memref.load %arg5[%c2_97, %c7_98] : memref<8x16xf32, #tpu.memory_space<smem>>
    %224 = vector.broadcast %223 : f32 to vector<8x128xf32>
    %225 = arith.mulf %194, %224 : vector<8x128xf32>
    %226 = arith.addf %151, %225 : vector<8x128xf32>
    %c2_99 = arith.constant 2 : index
    %c8_100 = arith.constant 8 : index
    %227 = memref.load %arg5[%c2_99, %c8_100] : memref<8x16xf32, #tpu.memory_space<smem>>
    %228 = vector.broadcast %227 : f32 to vector<8x128xf32>
    %229 = arith.mulf %194, %228 : vector<8x128xf32>
    %230 = arith.addf %155, %229 : vector<8x128xf32>
    %c2_101 = arith.constant 2 : index
    %c9_102 = arith.constant 9 : index
    %231 = memref.load %arg5[%c2_101, %c9_102] : memref<8x16xf32, #tpu.memory_space<smem>>
    %232 = vector.broadcast %231 : f32 to vector<8x128xf32>
    %233 = arith.mulf %194, %232 : vector<8x128xf32>
    %234 = arith.addf %159, %233 : vector<8x128xf32>
    %c2_103 = arith.constant 2 : index
    %c10_104 = arith.constant 10 : index
    %235 = memref.load %arg5[%c2_103, %c10_104] : memref<8x16xf32, #tpu.memory_space<smem>>
    %236 = vector.broadcast %235 : f32 to vector<8x128xf32>
    %237 = arith.mulf %194, %236 : vector<8x128xf32>
    %238 = arith.addf %163, %237 : vector<8x128xf32>
    %c2_105 = arith.constant 2 : index
    %c11_106 = arith.constant 11 : index
    %239 = memref.load %arg5[%c2_105, %c11_106] : memref<8x16xf32, #tpu.memory_space<smem>>
    %240 = vector.broadcast %239 : f32 to vector<8x128xf32>
    %241 = arith.mulf %194, %240 : vector<8x128xf32>
    %242 = arith.addf %167, %241 : vector<8x128xf32>
    %c2_107 = arith.constant 2 : index
    %c12_108 = arith.constant 12 : index
    %243 = memref.load %arg5[%c2_107, %c12_108] : memref<8x16xf32, #tpu.memory_space<smem>>
    %244 = vector.broadcast %243 : f32 to vector<8x128xf32>
    %245 = arith.mulf %194, %244 : vector<8x128xf32>
    %246 = arith.addf %171, %245 : vector<8x128xf32>
    %c2_109 = arith.constant 2 : index
    %c13_110 = arith.constant 13 : index
    %247 = memref.load %arg5[%c2_109, %c13_110] : memref<8x16xf32, #tpu.memory_space<smem>>
    %248 = vector.broadcast %247 : f32 to vector<8x128xf32>
    %249 = arith.mulf %194, %248 : vector<8x128xf32>
    %250 = arith.addf %175, %249 : vector<8x128xf32>
    %c2_111 = arith.constant 2 : index
    %c14_112 = arith.constant 14 : index
    %251 = memref.load %arg5[%c2_111, %c14_112] : memref<8x16xf32, #tpu.memory_space<smem>>
    %252 = vector.broadcast %251 : f32 to vector<8x128xf32>
    %253 = arith.mulf %194, %252 : vector<8x128xf32>
    %254 = arith.addf %179, %253 : vector<8x128xf32>
    %c2_113 = arith.constant 2 : index
    %c15_114 = arith.constant 15 : index
    %255 = memref.load %arg5[%c2_113, %c15_114] : memref<8x16xf32, #tpu.memory_space<smem>>
    %256 = vector.broadcast %255 : f32 to vector<8x128xf32>
    %257 = arith.mulf %194, %256 : vector<8x128xf32>
    %258 = arith.addf %183, %257 : vector<8x128xf32>
    %c0_115 = arith.constant 0 : index
    %c3_116 = arith.constant 3 : index
    %259 = memref.load %arg3[%c0_115, %c3_116] : memref<2x8xf32, #tpu.memory_space<smem>>
    %260 = vector.broadcast %259 : f32 to vector<8x128xf32>
    %261 = arith.mulf %0, %260 : vector<8x128xf32>
    %c1_117 = arith.constant 1 : index
    %c3_118 = arith.constant 3 : index
    %262 = memref.load %arg3[%c1_117, %c3_118] : memref<2x8xf32, #tpu.memory_space<smem>>
    %263 = vector.broadcast %262 : f32 to vector<8x128xf32>
    %264 = arith.mulf %1, %263 : vector<8x128xf32>
    %265 = arith.addf %261, %264 : vector<8x128xf32>
    %c3_119 = arith.constant 3 : index
    %266 = memref.load %arg4[%c3_119] : memref<8xf32, #tpu.memory_space<smem>>
    %267 = vector.broadcast %266 : f32 to vector<8x128xf32>
    %268 = arith.addf %265, %267 : vector<8x128xf32>
    %269 = math.tanh %268 : vector<8x128xf32>
    %c3_120 = arith.constant 3 : index
    %c0_121 = arith.constant 0 : index
    %270 = memref.load %arg5[%c3_120, %c0_121] : memref<8x16xf32, #tpu.memory_space<smem>>
    %271 = vector.broadcast %270 : f32 to vector<8x128xf32>
    %272 = arith.mulf %269, %271 : vector<8x128xf32>
    %273 = arith.addf %198, %272 : vector<8x128xf32>
    %c3_122 = arith.constant 3 : index
    %c1_123 = arith.constant 1 : index
    %274 = memref.load %arg5[%c3_122, %c1_123] : memref<8x16xf32, #tpu.memory_space<smem>>
    %275 = vector.broadcast %274 : f32 to vector<8x128xf32>
    %276 = arith.mulf %269, %275 : vector<8x128xf32>
    %277 = arith.addf %202, %276 : vector<8x128xf32>
    %c3_124 = arith.constant 3 : index
    %c2_125 = arith.constant 2 : index
    %278 = memref.load %arg5[%c3_124, %c2_125] : memref<8x16xf32, #tpu.memory_space<smem>>
    %279 = vector.broadcast %278 : f32 to vector<8x128xf32>
    %280 = arith.mulf %269, %279 : vector<8x128xf32>
    %281 = arith.addf %206, %280 : vector<8x128xf32>
    %c3_126 = arith.constant 3 : index
    %c3_127 = arith.constant 3 : index
    %282 = memref.load %arg5[%c3_126, %c3_127] : memref<8x16xf32, #tpu.memory_space<smem>>
    %283 = vector.broadcast %282 : f32 to vector<8x128xf32>
    %284 = arith.mulf %269, %283 : vector<8x128xf32>
    %285 = arith.addf %210, %284 : vector<8x128xf32>
    %c3_128 = arith.constant 3 : index
    %c4_129 = arith.constant 4 : index
    %286 = memref.load %arg5[%c3_128, %c4_129] : memref<8x16xf32, #tpu.memory_space<smem>>
    %287 = vector.broadcast %286 : f32 to vector<8x128xf32>
    %288 = arith.mulf %269, %287 : vector<8x128xf32>
    %289 = arith.addf %214, %288 : vector<8x128xf32>
    %c3_130 = arith.constant 3 : index
    %c5_131 = arith.constant 5 : index
    %290 = memref.load %arg5[%c3_130, %c5_131] : memref<8x16xf32, #tpu.memory_space<smem>>
    %291 = vector.broadcast %290 : f32 to vector<8x128xf32>
    %292 = arith.mulf %269, %291 : vector<8x128xf32>
    %293 = arith.addf %218, %292 : vector<8x128xf32>
    %c3_132 = arith.constant 3 : index
    %c6_133 = arith.constant 6 : index
    %294 = memref.load %arg5[%c3_132, %c6_133] : memref<8x16xf32, #tpu.memory_space<smem>>
    %295 = vector.broadcast %294 : f32 to vector<8x128xf32>
    %296 = arith.mulf %269, %295 : vector<8x128xf32>
    %297 = arith.addf %222, %296 : vector<8x128xf32>
    %c3_134 = arith.constant 3 : index
    %c7_135 = arith.constant 7 : index
    %298 = memref.load %arg5[%c3_134, %c7_135] : memref<8x16xf32, #tpu.memory_space<smem>>
    %299 = vector.broadcast %298 : f32 to vector<8x128xf32>
    %300 = arith.mulf %269, %299 : vector<8x128xf32>
    %301 = arith.addf %226, %300 : vector<8x128xf32>
    %c3_136 = arith.constant 3 : index
    %c8_137 = arith.constant 8 : index
    %302 = memref.load %arg5[%c3_136, %c8_137] : memref<8x16xf32, #tpu.memory_space<smem>>
    %303 = vector.broadcast %302 : f32 to vector<8x128xf32>
    %304 = arith.mulf %269, %303 : vector<8x128xf32>
    %305 = arith.addf %230, %304 : vector<8x128xf32>
    %c3_138 = arith.constant 3 : index
    %c9_139 = arith.constant 9 : index
    %306 = memref.load %arg5[%c3_138, %c9_139] : memref<8x16xf32, #tpu.memory_space<smem>>
    %307 = vector.broadcast %306 : f32 to vector<8x128xf32>
    %308 = arith.mulf %269, %307 : vector<8x128xf32>
    %309 = arith.addf %234, %308 : vector<8x128xf32>
    %c3_140 = arith.constant 3 : index
    %c10_141 = arith.constant 10 : index
    %310 = memref.load %arg5[%c3_140, %c10_141] : memref<8x16xf32, #tpu.memory_space<smem>>
    %311 = vector.broadcast %310 : f32 to vector<8x128xf32>
    %312 = arith.mulf %269, %311 : vector<8x128xf32>
    %313 = arith.addf %238, %312 : vector<8x128xf32>
    %c3_142 = arith.constant 3 : index
    %c11_143 = arith.constant 11 : index
    %314 = memref.load %arg5[%c3_142, %c11_143] : memref<8x16xf32, #tpu.memory_space<smem>>
    %315 = vector.broadcast %314 : f32 to vector<8x128xf32>
    %316 = arith.mulf %269, %315 : vector<8x128xf32>
    %317 = arith.addf %242, %316 : vector<8x128xf32>
    %c3_144 = arith.constant 3 : index
    %c12_145 = arith.constant 12 : index
    %318 = memref.load %arg5[%c3_144, %c12_145] : memref<8x16xf32, #tpu.memory_space<smem>>
    %319 = vector.broadcast %318 : f32 to vector<8x128xf32>
    %320 = arith.mulf %269, %319 : vector<8x128xf32>
    %321 = arith.addf %246, %320 : vector<8x128xf32>
    %c3_146 = arith.constant 3 : index
    %c13_147 = arith.constant 13 : index
    %322 = memref.load %arg5[%c3_146, %c13_147] : memref<8x16xf32, #tpu.memory_space<smem>>
    %323 = vector.broadcast %322 : f32 to vector<8x128xf32>
    %324 = arith.mulf %269, %323 : vector<8x128xf32>
    %325 = arith.addf %250, %324 : vector<8x128xf32>
    %c3_148 = arith.constant 3 : index
    %c14_149 = arith.constant 14 : index
    %326 = memref.load %arg5[%c3_148, %c14_149] : memref<8x16xf32, #tpu.memory_space<smem>>
    %327 = vector.broadcast %326 : f32 to vector<8x128xf32>
    %328 = arith.mulf %269, %327 : vector<8x128xf32>
    %329 = arith.addf %254, %328 : vector<8x128xf32>
    %c3_150 = arith.constant 3 : index
    %c15_151 = arith.constant 15 : index
    %330 = memref.load %arg5[%c3_150, %c15_151] : memref<8x16xf32, #tpu.memory_space<smem>>
    %331 = vector.broadcast %330 : f32 to vector<8x128xf32>
    %332 = arith.mulf %269, %331 : vector<8x128xf32>
    %333 = arith.addf %258, %332 : vector<8x128xf32>
    %c0_152 = arith.constant 0 : index
    %c4_153 = arith.constant 4 : index
    %334 = memref.load %arg3[%c0_152, %c4_153] : memref<2x8xf32, #tpu.memory_space<smem>>
    %335 = vector.broadcast %334 : f32 to vector<8x128xf32>
    %336 = arith.mulf %0, %335 : vector<8x128xf32>
    %c1_154 = arith.constant 1 : index
    %c4_155 = arith.constant 4 : index
    %337 = memref.load %arg3[%c1_154, %c4_155] : memref<2x8xf32, #tpu.memory_space<smem>>
    %338 = vector.broadcast %337 : f32 to vector<8x128xf32>
    %339 = arith.mulf %1, %338 : vector<8x128xf32>
    %340 = arith.addf %336, %339 : vector<8x128xf32>
    %c4_156 = arith.constant 4 : index
    %341 = memref.load %arg4[%c4_156] : memref<8xf32, #tpu.memory_space<smem>>
    %342 = vector.broadcast %341 : f32 to vector<8x128xf32>
    %343 = arith.addf %340, %342 : vector<8x128xf32>
    %344 = math.tanh %343 : vector<8x128xf32>
    %c4_157 = arith.constant 4 : index
    %c0_158 = arith.constant 0 : index
    %345 = memref.load %arg5[%c4_157, %c0_158] : memref<8x16xf32, #tpu.memory_space<smem>>
    %346 = vector.broadcast %345 : f32 to vector<8x128xf32>
    %347 = arith.mulf %344, %346 : vector<8x128xf32>
    %348 = arith.addf %273, %347 : vector<8x128xf32>
    %c4_159 = arith.constant 4 : index
    %c1_160 = arith.constant 1 : index
    %349 = memref.load %arg5[%c4_159, %c1_160] : memref<8x16xf32, #tpu.memory_space<smem>>
    %350 = vector.broadcast %349 : f32 to vector<8x128xf32>
    %351 = arith.mulf %344, %350 : vector<8x128xf32>
    %352 = arith.addf %277, %351 : vector<8x128xf32>
    %c4_161 = arith.constant 4 : index
    %c2_162 = arith.constant 2 : index
    %353 = memref.load %arg5[%c4_161, %c2_162] : memref<8x16xf32, #tpu.memory_space<smem>>
    %354 = vector.broadcast %353 : f32 to vector<8x128xf32>
    %355 = arith.mulf %344, %354 : vector<8x128xf32>
    %356 = arith.addf %281, %355 : vector<8x128xf32>
    %c4_163 = arith.constant 4 : index
    %c3_164 = arith.constant 3 : index
    %357 = memref.load %arg5[%c4_163, %c3_164] : memref<8x16xf32, #tpu.memory_space<smem>>
    %358 = vector.broadcast %357 : f32 to vector<8x128xf32>
    %359 = arith.mulf %344, %358 : vector<8x128xf32>
    %360 = arith.addf %285, %359 : vector<8x128xf32>
    %c4_165 = arith.constant 4 : index
    %c4_166 = arith.constant 4 : index
    %361 = memref.load %arg5[%c4_165, %c4_166] : memref<8x16xf32, #tpu.memory_space<smem>>
    %362 = vector.broadcast %361 : f32 to vector<8x128xf32>
    %363 = arith.mulf %344, %362 : vector<8x128xf32>
    %364 = arith.addf %289, %363 : vector<8x128xf32>
    %c4_167 = arith.constant 4 : index
    %c5_168 = arith.constant 5 : index
    %365 = memref.load %arg5[%c4_167, %c5_168] : memref<8x16xf32, #tpu.memory_space<smem>>
    %366 = vector.broadcast %365 : f32 to vector<8x128xf32>
    %367 = arith.mulf %344, %366 : vector<8x128xf32>
    %368 = arith.addf %293, %367 : vector<8x128xf32>
    %c4_169 = arith.constant 4 : index
    %c6_170 = arith.constant 6 : index
    %369 = memref.load %arg5[%c4_169, %c6_170] : memref<8x16xf32, #tpu.memory_space<smem>>
    %370 = vector.broadcast %369 : f32 to vector<8x128xf32>
    %371 = arith.mulf %344, %370 : vector<8x128xf32>
    %372 = arith.addf %297, %371 : vector<8x128xf32>
    %c4_171 = arith.constant 4 : index
    %c7_172 = arith.constant 7 : index
    %373 = memref.load %arg5[%c4_171, %c7_172] : memref<8x16xf32, #tpu.memory_space<smem>>
    %374 = vector.broadcast %373 : f32 to vector<8x128xf32>
    %375 = arith.mulf %344, %374 : vector<8x128xf32>
    %376 = arith.addf %301, %375 : vector<8x128xf32>
    %c4_173 = arith.constant 4 : index
    %c8_174 = arith.constant 8 : index
    %377 = memref.load %arg5[%c4_173, %c8_174] : memref<8x16xf32, #tpu.memory_space<smem>>
    %378 = vector.broadcast %377 : f32 to vector<8x128xf32>
    %379 = arith.mulf %344, %378 : vector<8x128xf32>
    %380 = arith.addf %305, %379 : vector<8x128xf32>
    %c4_175 = arith.constant 4 : index
    %c9_176 = arith.constant 9 : index
    %381 = memref.load %arg5[%c4_175, %c9_176] : memref<8x16xf32, #tpu.memory_space<smem>>
    %382 = vector.broadcast %381 : f32 to vector<8x128xf32>
    %383 = arith.mulf %344, %382 : vector<8x128xf32>
    %384 = arith.addf %309, %383 : vector<8x128xf32>
    %c4_177 = arith.constant 4 : index
    %c10_178 = arith.constant 10 : index
    %385 = memref.load %arg5[%c4_177, %c10_178] : memref<8x16xf32, #tpu.memory_space<smem>>
    %386 = vector.broadcast %385 : f32 to vector<8x128xf32>
    %387 = arith.mulf %344, %386 : vector<8x128xf32>
    %388 = arith.addf %313, %387 : vector<8x128xf32>
    %c4_179 = arith.constant 4 : index
    %c11_180 = arith.constant 11 : index
    %389 = memref.load %arg5[%c4_179, %c11_180] : memref<8x16xf32, #tpu.memory_space<smem>>
    %390 = vector.broadcast %389 : f32 to vector<8x128xf32>
    %391 = arith.mulf %344, %390 : vector<8x128xf32>
    %392 = arith.addf %317, %391 : vector<8x128xf32>
    %c4_181 = arith.constant 4 : index
    %c12_182 = arith.constant 12 : index
    %393 = memref.load %arg5[%c4_181, %c12_182] : memref<8x16xf32, #tpu.memory_space<smem>>
    %394 = vector.broadcast %393 : f32 to vector<8x128xf32>
    %395 = arith.mulf %344, %394 : vector<8x128xf32>
    %396 = arith.addf %321, %395 : vector<8x128xf32>
    %c4_183 = arith.constant 4 : index
    %c13_184 = arith.constant 13 : index
    %397 = memref.load %arg5[%c4_183, %c13_184] : memref<8x16xf32, #tpu.memory_space<smem>>
    %398 = vector.broadcast %397 : f32 to vector<8x128xf32>
    %399 = arith.mulf %344, %398 : vector<8x128xf32>
    %400 = arith.addf %325, %399 : vector<8x128xf32>
    %c4_185 = arith.constant 4 : index
    %c14_186 = arith.constant 14 : index
    %401 = memref.load %arg5[%c4_185, %c14_186] : memref<8x16xf32, #tpu.memory_space<smem>>
    %402 = vector.broadcast %401 : f32 to vector<8x128xf32>
    %403 = arith.mulf %344, %402 : vector<8x128xf32>
    %404 = arith.addf %329, %403 : vector<8x128xf32>
    %c4_187 = arith.constant 4 : index
    %c15_188 = arith.constant 15 : index
    %405 = memref.load %arg5[%c4_187, %c15_188] : memref<8x16xf32, #tpu.memory_space<smem>>
    %406 = vector.broadcast %405 : f32 to vector<8x128xf32>
    %407 = arith.mulf %344, %406 : vector<8x128xf32>
    %408 = arith.addf %333, %407 : vector<8x128xf32>
    %c0_189 = arith.constant 0 : index
    %c5_190 = arith.constant 5 : index
    %409 = memref.load %arg3[%c0_189, %c5_190] : memref<2x8xf32, #tpu.memory_space<smem>>
    %410 = vector.broadcast %409 : f32 to vector<8x128xf32>
    %411 = arith.mulf %0, %410 : vector<8x128xf32>
    %c1_191 = arith.constant 1 : index
    %c5_192 = arith.constant 5 : index
    %412 = memref.load %arg3[%c1_191, %c5_192] : memref<2x8xf32, #tpu.memory_space<smem>>
    %413 = vector.broadcast %412 : f32 to vector<8x128xf32>
    %414 = arith.mulf %1, %413 : vector<8x128xf32>
    %415 = arith.addf %411, %414 : vector<8x128xf32>
    %c5_193 = arith.constant 5 : index
    %416 = memref.load %arg4[%c5_193] : memref<8xf32, #tpu.memory_space<smem>>
    %417 = vector.broadcast %416 : f32 to vector<8x128xf32>
    %418 = arith.addf %415, %417 : vector<8x128xf32>
    %419 = math.tanh %418 : vector<8x128xf32>
    %c5_194 = arith.constant 5 : index
    %c0_195 = arith.constant 0 : index
    %420 = memref.load %arg5[%c5_194, %c0_195] : memref<8x16xf32, #tpu.memory_space<smem>>
    %421 = vector.broadcast %420 : f32 to vector<8x128xf32>
    %422 = arith.mulf %419, %421 : vector<8x128xf32>
    %423 = arith.addf %348, %422 : vector<8x128xf32>
    %c5_196 = arith.constant 5 : index
    %c1_197 = arith.constant 1 : index
    %424 = memref.load %arg5[%c5_196, %c1_197] : memref<8x16xf32, #tpu.memory_space<smem>>
    %425 = vector.broadcast %424 : f32 to vector<8x128xf32>
    %426 = arith.mulf %419, %425 : vector<8x128xf32>
    %427 = arith.addf %352, %426 : vector<8x128xf32>
    %c5_198 = arith.constant 5 : index
    %c2_199 = arith.constant 2 : index
    %428 = memref.load %arg5[%c5_198, %c2_199] : memref<8x16xf32, #tpu.memory_space<smem>>
    %429 = vector.broadcast %428 : f32 to vector<8x128xf32>
    %430 = arith.mulf %419, %429 : vector<8x128xf32>
    %431 = arith.addf %356, %430 : vector<8x128xf32>
    %c5_200 = arith.constant 5 : index
    %c3_201 = arith.constant 3 : index
    %432 = memref.load %arg5[%c5_200, %c3_201] : memref<8x16xf32, #tpu.memory_space<smem>>
    %433 = vector.broadcast %432 : f32 to vector<8x128xf32>
    %434 = arith.mulf %419, %433 : vector<8x128xf32>
    %435 = arith.addf %360, %434 : vector<8x128xf32>
    %c5_202 = arith.constant 5 : index
    %c4_203 = arith.constant 4 : index
    %436 = memref.load %arg5[%c5_202, %c4_203] : memref<8x16xf32, #tpu.memory_space<smem>>
    %437 = vector.broadcast %436 : f32 to vector<8x128xf32>
    %438 = arith.mulf %419, %437 : vector<8x128xf32>
    %439 = arith.addf %364, %438 : vector<8x128xf32>
    %c5_204 = arith.constant 5 : index
    %c5_205 = arith.constant 5 : index
    %440 = memref.load %arg5[%c5_204, %c5_205] : memref<8x16xf32, #tpu.memory_space<smem>>
    %441 = vector.broadcast %440 : f32 to vector<8x128xf32>
    %442 = arith.mulf %419, %441 : vector<8x128xf32>
    %443 = arith.addf %368, %442 : vector<8x128xf32>
    %c5_206 = arith.constant 5 : index
    %c6_207 = arith.constant 6 : index
    %444 = memref.load %arg5[%c5_206, %c6_207] : memref<8x16xf32, #tpu.memory_space<smem>>
    %445 = vector.broadcast %444 : f32 to vector<8x128xf32>
    %446 = arith.mulf %419, %445 : vector<8x128xf32>
    %447 = arith.addf %372, %446 : vector<8x128xf32>
    %c5_208 = arith.constant 5 : index
    %c7_209 = arith.constant 7 : index
    %448 = memref.load %arg5[%c5_208, %c7_209] : memref<8x16xf32, #tpu.memory_space<smem>>
    %449 = vector.broadcast %448 : f32 to vector<8x128xf32>
    %450 = arith.mulf %419, %449 : vector<8x128xf32>
    %451 = arith.addf %376, %450 : vector<8x128xf32>
    %c5_210 = arith.constant 5 : index
    %c8_211 = arith.constant 8 : index
    %452 = memref.load %arg5[%c5_210, %c8_211] : memref<8x16xf32, #tpu.memory_space<smem>>
    %453 = vector.broadcast %452 : f32 to vector<8x128xf32>
    %454 = arith.mulf %419, %453 : vector<8x128xf32>
    %455 = arith.addf %380, %454 : vector<8x128xf32>
    %c5_212 = arith.constant 5 : index
    %c9_213 = arith.constant 9 : index
    %456 = memref.load %arg5[%c5_212, %c9_213] : memref<8x16xf32, #tpu.memory_space<smem>>
    %457 = vector.broadcast %456 : f32 to vector<8x128xf32>
    %458 = arith.mulf %419, %457 : vector<8x128xf32>
    %459 = arith.addf %384, %458 : vector<8x128xf32>
    %c5_214 = arith.constant 5 : index
    %c10_215 = arith.constant 10 : index
    %460 = memref.load %arg5[%c5_214, %c10_215] : memref<8x16xf32, #tpu.memory_space<smem>>
    %461 = vector.broadcast %460 : f32 to vector<8x128xf32>
    %462 = arith.mulf %419, %461 : vector<8x128xf32>
    %463 = arith.addf %388, %462 : vector<8x128xf32>
    %c5_216 = arith.constant 5 : index
    %c11_217 = arith.constant 11 : index
    %464 = memref.load %arg5[%c5_216, %c11_217] : memref<8x16xf32, #tpu.memory_space<smem>>
    %465 = vector.broadcast %464 : f32 to vector<8x128xf32>
    %466 = arith.mulf %419, %465 : vector<8x128xf32>
    %467 = arith.addf %392, %466 : vector<8x128xf32>
    %c5_218 = arith.constant 5 : index
    %c12_219 = arith.constant 12 : index
    %468 = memref.load %arg5[%c5_218, %c12_219] : memref<8x16xf32, #tpu.memory_space<smem>>
    %469 = vector.broadcast %468 : f32 to vector<8x128xf32>
    %470 = arith.mulf %419, %469 : vector<8x128xf32>
    %471 = arith.addf %396, %470 : vector<8x128xf32>
    %c5_220 = arith.constant 5 : index
    %c13_221 = arith.constant 13 : index
    %472 = memref.load %arg5[%c5_220, %c13_221] : memref<8x16xf32, #tpu.memory_space<smem>>
    %473 = vector.broadcast %472 : f32 to vector<8x128xf32>
    %474 = arith.mulf %419, %473 : vector<8x128xf32>
    %475 = arith.addf %400, %474 : vector<8x128xf32>
    %c5_222 = arith.constant 5 : index
    %c14_223 = arith.constant 14 : index
    %476 = memref.load %arg5[%c5_222, %c14_223] : memref<8x16xf32, #tpu.memory_space<smem>>
    %477 = vector.broadcast %476 : f32 to vector<8x128xf32>
    %478 = arith.mulf %419, %477 : vector<8x128xf32>
    %479 = arith.addf %404, %478 : vector<8x128xf32>
    %c5_224 = arith.constant 5 : index
    %c15_225 = arith.constant 15 : index
    %480 = memref.load %arg5[%c5_224, %c15_225] : memref<8x16xf32, #tpu.memory_space<smem>>
    %481 = vector.broadcast %480 : f32 to vector<8x128xf32>
    %482 = arith.mulf %419, %481 : vector<8x128xf32>
    %483 = arith.addf %408, %482 : vector<8x128xf32>
    %c0_226 = arith.constant 0 : index
    %c6_227 = arith.constant 6 : index
    %484 = memref.load %arg3[%c0_226, %c6_227] : memref<2x8xf32, #tpu.memory_space<smem>>
    %485 = vector.broadcast %484 : f32 to vector<8x128xf32>
    %486 = arith.mulf %0, %485 : vector<8x128xf32>
    %c1_228 = arith.constant 1 : index
    %c6_229 = arith.constant 6 : index
    %487 = memref.load %arg3[%c1_228, %c6_229] : memref<2x8xf32, #tpu.memory_space<smem>>
    %488 = vector.broadcast %487 : f32 to vector<8x128xf32>
    %489 = arith.mulf %1, %488 : vector<8x128xf32>
    %490 = arith.addf %486, %489 : vector<8x128xf32>
    %c6_230 = arith.constant 6 : index
    %491 = memref.load %arg4[%c6_230] : memref<8xf32, #tpu.memory_space<smem>>
    %492 = vector.broadcast %491 : f32 to vector<8x128xf32>
    %493 = arith.addf %490, %492 : vector<8x128xf32>
    %494 = math.tanh %493 : vector<8x128xf32>
    %c6_231 = arith.constant 6 : index
    %c0_232 = arith.constant 0 : index
    %495 = memref.load %arg5[%c6_231, %c0_232] : memref<8x16xf32, #tpu.memory_space<smem>>
    %496 = vector.broadcast %495 : f32 to vector<8x128xf32>
    %497 = arith.mulf %494, %496 : vector<8x128xf32>
    %498 = arith.addf %423, %497 : vector<8x128xf32>
    %c6_233 = arith.constant 6 : index
    %c1_234 = arith.constant 1 : index
    %499 = memref.load %arg5[%c6_233, %c1_234] : memref<8x16xf32, #tpu.memory_space<smem>>
    %500 = vector.broadcast %499 : f32 to vector<8x128xf32>
    %501 = arith.mulf %494, %500 : vector<8x128xf32>
    %502 = arith.addf %427, %501 : vector<8x128xf32>
    %c6_235 = arith.constant 6 : index
    %c2_236 = arith.constant 2 : index
    %503 = memref.load %arg5[%c6_235, %c2_236] : memref<8x16xf32, #tpu.memory_space<smem>>
    %504 = vector.broadcast %503 : f32 to vector<8x128xf32>
    %505 = arith.mulf %494, %504 : vector<8x128xf32>
    %506 = arith.addf %431, %505 : vector<8x128xf32>
    %c6_237 = arith.constant 6 : index
    %c3_238 = arith.constant 3 : index
    %507 = memref.load %arg5[%c6_237, %c3_238] : memref<8x16xf32, #tpu.memory_space<smem>>
    %508 = vector.broadcast %507 : f32 to vector<8x128xf32>
    %509 = arith.mulf %494, %508 : vector<8x128xf32>
    %510 = arith.addf %435, %509 : vector<8x128xf32>
    %c6_239 = arith.constant 6 : index
    %c4_240 = arith.constant 4 : index
    %511 = memref.load %arg5[%c6_239, %c4_240] : memref<8x16xf32, #tpu.memory_space<smem>>
    %512 = vector.broadcast %511 : f32 to vector<8x128xf32>
    %513 = arith.mulf %494, %512 : vector<8x128xf32>
    %514 = arith.addf %439, %513 : vector<8x128xf32>
    %c6_241 = arith.constant 6 : index
    %c5_242 = arith.constant 5 : index
    %515 = memref.load %arg5[%c6_241, %c5_242] : memref<8x16xf32, #tpu.memory_space<smem>>
    %516 = vector.broadcast %515 : f32 to vector<8x128xf32>
    %517 = arith.mulf %494, %516 : vector<8x128xf32>
    %518 = arith.addf %443, %517 : vector<8x128xf32>
    %c6_243 = arith.constant 6 : index
    %c6_244 = arith.constant 6 : index
    %519 = memref.load %arg5[%c6_243, %c6_244] : memref<8x16xf32, #tpu.memory_space<smem>>
    %520 = vector.broadcast %519 : f32 to vector<8x128xf32>
    %521 = arith.mulf %494, %520 : vector<8x128xf32>
    %522 = arith.addf %447, %521 : vector<8x128xf32>
    %c6_245 = arith.constant 6 : index
    %c7_246 = arith.constant 7 : index
    %523 = memref.load %arg5[%c6_245, %c7_246] : memref<8x16xf32, #tpu.memory_space<smem>>
    %524 = vector.broadcast %523 : f32 to vector<8x128xf32>
    %525 = arith.mulf %494, %524 : vector<8x128xf32>
    %526 = arith.addf %451, %525 : vector<8x128xf32>
    %c6_247 = arith.constant 6 : index
    %c8_248 = arith.constant 8 : index
    %527 = memref.load %arg5[%c6_247, %c8_248] : memref<8x16xf32, #tpu.memory_space<smem>>
    %528 = vector.broadcast %527 : f32 to vector<8x128xf32>
    %529 = arith.mulf %494, %528 : vector<8x128xf32>
    %530 = arith.addf %455, %529 : vector<8x128xf32>
    %c6_249 = arith.constant 6 : index
    %c9_250 = arith.constant 9 : index
    %531 = memref.load %arg5[%c6_249, %c9_250] : memref<8x16xf32, #tpu.memory_space<smem>>
    %532 = vector.broadcast %531 : f32 to vector<8x128xf32>
    %533 = arith.mulf %494, %532 : vector<8x128xf32>
    %534 = arith.addf %459, %533 : vector<8x128xf32>
    %c6_251 = arith.constant 6 : index
    %c10_252 = arith.constant 10 : index
    %535 = memref.load %arg5[%c6_251, %c10_252] : memref<8x16xf32, #tpu.memory_space<smem>>
    %536 = vector.broadcast %535 : f32 to vector<8x128xf32>
    %537 = arith.mulf %494, %536 : vector<8x128xf32>
    %538 = arith.addf %463, %537 : vector<8x128xf32>
    %c6_253 = arith.constant 6 : index
    %c11_254 = arith.constant 11 : index
    %539 = memref.load %arg5[%c6_253, %c11_254] : memref<8x16xf32, #tpu.memory_space<smem>>
    %540 = vector.broadcast %539 : f32 to vector<8x128xf32>
    %541 = arith.mulf %494, %540 : vector<8x128xf32>
    %542 = arith.addf %467, %541 : vector<8x128xf32>
    %c6_255 = arith.constant 6 : index
    %c12_256 = arith.constant 12 : index
    %543 = memref.load %arg5[%c6_255, %c12_256] : memref<8x16xf32, #tpu.memory_space<smem>>
    %544 = vector.broadcast %543 : f32 to vector<8x128xf32>
    %545 = arith.mulf %494, %544 : vector<8x128xf32>
    %546 = arith.addf %471, %545 : vector<8x128xf32>
    %c6_257 = arith.constant 6 : index
    %c13_258 = arith.constant 13 : index
    %547 = memref.load %arg5[%c6_257, %c13_258] : memref<8x16xf32, #tpu.memory_space<smem>>
    %548 = vector.broadcast %547 : f32 to vector<8x128xf32>
    %549 = arith.mulf %494, %548 : vector<8x128xf32>
    %550 = arith.addf %475, %549 : vector<8x128xf32>
    %c6_259 = arith.constant 6 : index
    %c14_260 = arith.constant 14 : index
    %551 = memref.load %arg5[%c6_259, %c14_260] : memref<8x16xf32, #tpu.memory_space<smem>>
    %552 = vector.broadcast %551 : f32 to vector<8x128xf32>
    %553 = arith.mulf %494, %552 : vector<8x128xf32>
    %554 = arith.addf %479, %553 : vector<8x128xf32>
    %c6_261 = arith.constant 6 : index
    %c15_262 = arith.constant 15 : index
    %555 = memref.load %arg5[%c6_261, %c15_262] : memref<8x16xf32, #tpu.memory_space<smem>>
    %556 = vector.broadcast %555 : f32 to vector<8x128xf32>
    %557 = arith.mulf %494, %556 : vector<8x128xf32>
    %558 = arith.addf %483, %557 : vector<8x128xf32>
    %c0_263 = arith.constant 0 : index
    %c7_264 = arith.constant 7 : index
    %559 = memref.load %arg3[%c0_263, %c7_264] : memref<2x8xf32, #tpu.memory_space<smem>>
    %560 = vector.broadcast %559 : f32 to vector<8x128xf32>
    %561 = arith.mulf %0, %560 : vector<8x128xf32>
    %c1_265 = arith.constant 1 : index
    %c7_266 = arith.constant 7 : index
    %562 = memref.load %arg3[%c1_265, %c7_266] : memref<2x8xf32, #tpu.memory_space<smem>>
    %563 = vector.broadcast %562 : f32 to vector<8x128xf32>
    %564 = arith.mulf %1, %563 : vector<8x128xf32>
    %565 = arith.addf %561, %564 : vector<8x128xf32>
    %c7_267 = arith.constant 7 : index
    %566 = memref.load %arg4[%c7_267] : memref<8xf32, #tpu.memory_space<smem>>
    %567 = vector.broadcast %566 : f32 to vector<8x128xf32>
    %568 = arith.addf %565, %567 : vector<8x128xf32>
    %569 = math.tanh %568 : vector<8x128xf32>
    %c7_268 = arith.constant 7 : index
    %c0_269 = arith.constant 0 : index
    %570 = memref.load %arg5[%c7_268, %c0_269] : memref<8x16xf32, #tpu.memory_space<smem>>
    %571 = vector.broadcast %570 : f32 to vector<8x128xf32>
    %572 = arith.mulf %569, %571 : vector<8x128xf32>
    %573 = arith.addf %498, %572 : vector<8x128xf32>
    %c7_270 = arith.constant 7 : index
    %c1_271 = arith.constant 1 : index
    %574 = memref.load %arg5[%c7_270, %c1_271] : memref<8x16xf32, #tpu.memory_space<smem>>
    %575 = vector.broadcast %574 : f32 to vector<8x128xf32>
    %576 = arith.mulf %569, %575 : vector<8x128xf32>
    %577 = arith.addf %502, %576 : vector<8x128xf32>
    %c7_272 = arith.constant 7 : index
    %c2_273 = arith.constant 2 : index
    %578 = memref.load %arg5[%c7_272, %c2_273] : memref<8x16xf32, #tpu.memory_space<smem>>
    %579 = vector.broadcast %578 : f32 to vector<8x128xf32>
    %580 = arith.mulf %569, %579 : vector<8x128xf32>
    %581 = arith.addf %506, %580 : vector<8x128xf32>
    %c7_274 = arith.constant 7 : index
    %c3_275 = arith.constant 3 : index
    %582 = memref.load %arg5[%c7_274, %c3_275] : memref<8x16xf32, #tpu.memory_space<smem>>
    %583 = vector.broadcast %582 : f32 to vector<8x128xf32>
    %584 = arith.mulf %569, %583 : vector<8x128xf32>
    %585 = arith.addf %510, %584 : vector<8x128xf32>
    %c7_276 = arith.constant 7 : index
    %c4_277 = arith.constant 4 : index
    %586 = memref.load %arg5[%c7_276, %c4_277] : memref<8x16xf32, #tpu.memory_space<smem>>
    %587 = vector.broadcast %586 : f32 to vector<8x128xf32>
    %588 = arith.mulf %569, %587 : vector<8x128xf32>
    %589 = arith.addf %514, %588 : vector<8x128xf32>
    %c7_278 = arith.constant 7 : index
    %c5_279 = arith.constant 5 : index
    %590 = memref.load %arg5[%c7_278, %c5_279] : memref<8x16xf32, #tpu.memory_space<smem>>
    %591 = vector.broadcast %590 : f32 to vector<8x128xf32>
    %592 = arith.mulf %569, %591 : vector<8x128xf32>
    %593 = arith.addf %518, %592 : vector<8x128xf32>
    %c7_280 = arith.constant 7 : index
    %c6_281 = arith.constant 6 : index
    %594 = memref.load %arg5[%c7_280, %c6_281] : memref<8x16xf32, #tpu.memory_space<smem>>
    %595 = vector.broadcast %594 : f32 to vector<8x128xf32>
    %596 = arith.mulf %569, %595 : vector<8x128xf32>
    %597 = arith.addf %522, %596 : vector<8x128xf32>
    %c7_282 = arith.constant 7 : index
    %c7_283 = arith.constant 7 : index
    %598 = memref.load %arg5[%c7_282, %c7_283] : memref<8x16xf32, #tpu.memory_space<smem>>
    %599 = vector.broadcast %598 : f32 to vector<8x128xf32>
    %600 = arith.mulf %569, %599 : vector<8x128xf32>
    %601 = arith.addf %526, %600 : vector<8x128xf32>
    %c7_284 = arith.constant 7 : index
    %c8_285 = arith.constant 8 : index
    %602 = memref.load %arg5[%c7_284, %c8_285] : memref<8x16xf32, #tpu.memory_space<smem>>
    %603 = vector.broadcast %602 : f32 to vector<8x128xf32>
    %604 = arith.mulf %569, %603 : vector<8x128xf32>
    %605 = arith.addf %530, %604 : vector<8x128xf32>
    %c7_286 = arith.constant 7 : index
    %c9_287 = arith.constant 9 : index
    %606 = memref.load %arg5[%c7_286, %c9_287] : memref<8x16xf32, #tpu.memory_space<smem>>
    %607 = vector.broadcast %606 : f32 to vector<8x128xf32>
    %608 = arith.mulf %569, %607 : vector<8x128xf32>
    %609 = arith.addf %534, %608 : vector<8x128xf32>
    %c7_288 = arith.constant 7 : index
    %c10_289 = arith.constant 10 : index
    %610 = memref.load %arg5[%c7_288, %c10_289] : memref<8x16xf32, #tpu.memory_space<smem>>
    %611 = vector.broadcast %610 : f32 to vector<8x128xf32>
    %612 = arith.mulf %569, %611 : vector<8x128xf32>
    %613 = arith.addf %538, %612 : vector<8x128xf32>
    %c7_290 = arith.constant 7 : index
    %c11_291 = arith.constant 11 : index
    %614 = memref.load %arg5[%c7_290, %c11_291] : memref<8x16xf32, #tpu.memory_space<smem>>
    %615 = vector.broadcast %614 : f32 to vector<8x128xf32>
    %616 = arith.mulf %569, %615 : vector<8x128xf32>
    %617 = arith.addf %542, %616 : vector<8x128xf32>
    %c7_292 = arith.constant 7 : index
    %c12_293 = arith.constant 12 : index
    %618 = memref.load %arg5[%c7_292, %c12_293] : memref<8x16xf32, #tpu.memory_space<smem>>
    %619 = vector.broadcast %618 : f32 to vector<8x128xf32>
    %620 = arith.mulf %569, %619 : vector<8x128xf32>
    %621 = arith.addf %546, %620 : vector<8x128xf32>
    %c7_294 = arith.constant 7 : index
    %c13_295 = arith.constant 13 : index
    %622 = memref.load %arg5[%c7_294, %c13_295] : memref<8x16xf32, #tpu.memory_space<smem>>
    %623 = vector.broadcast %622 : f32 to vector<8x128xf32>
    %624 = arith.mulf %569, %623 : vector<8x128xf32>
    %625 = arith.addf %550, %624 : vector<8x128xf32>
    %c7_296 = arith.constant 7 : index
    %c14_297 = arith.constant 14 : index
    %626 = memref.load %arg5[%c7_296, %c14_297] : memref<8x16xf32, #tpu.memory_space<smem>>
    %627 = vector.broadcast %626 : f32 to vector<8x128xf32>
    %628 = arith.mulf %569, %627 : vector<8x128xf32>
    %629 = arith.addf %554, %628 : vector<8x128xf32>
    %c7_298 = arith.constant 7 : index
    %c15_299 = arith.constant 15 : index
    %630 = memref.load %arg5[%c7_298, %c15_299] : memref<8x16xf32, #tpu.memory_space<smem>>
    %631 = vector.broadcast %630 : f32 to vector<8x128xf32>
    %632 = arith.mulf %569, %631 : vector<8x128xf32>
    %633 = arith.addf %558, %632 : vector<8x128xf32>
    %cst = arith.constant 0.000000e+00 : f32
    %634 = vector.broadcast %cst : f32 to vector<8x128xf32>
    %635 = arith.maximumf %573, %634 : vector<8x128xf32>
    %c0_300 = arith.constant 0 : index
    %636 = memref.load %arg7[%c0_300] : memref<16xf32, #tpu.memory_space<smem>>
    %637 = vector.broadcast %636 : f32 to vector<8x128xf32>
    %638 = arith.mulf %635, %637 : vector<8x128xf32>
    %cst_301 = arith.constant 0.000000e+00 : f32
    %639 = vector.broadcast %cst_301 : f32 to vector<8x128xf32>
    %640 = arith.maximumf %577, %639 : vector<8x128xf32>
    %c1_302 = arith.constant 1 : index
    %641 = memref.load %arg7[%c1_302] : memref<16xf32, #tpu.memory_space<smem>>
    %642 = vector.broadcast %641 : f32 to vector<8x128xf32>
    %643 = arith.mulf %640, %642 : vector<8x128xf32>
    %644 = arith.addf %638, %643 : vector<8x128xf32>
    %cst_303 = arith.constant 0.000000e+00 : f32
    %645 = vector.broadcast %cst_303 : f32 to vector<8x128xf32>
    %646 = arith.maximumf %581, %645 : vector<8x128xf32>
    %c2_304 = arith.constant 2 : index
    %647 = memref.load %arg7[%c2_304] : memref<16xf32, #tpu.memory_space<smem>>
    %648 = vector.broadcast %647 : f32 to vector<8x128xf32>
    %649 = arith.mulf %646, %648 : vector<8x128xf32>
    %650 = arith.addf %644, %649 : vector<8x128xf32>
    %cst_305 = arith.constant 0.000000e+00 : f32
    %651 = vector.broadcast %cst_305 : f32 to vector<8x128xf32>
    %652 = arith.maximumf %585, %651 : vector<8x128xf32>
    %c3_306 = arith.constant 3 : index
    %653 = memref.load %arg7[%c3_306] : memref<16xf32, #tpu.memory_space<smem>>
    %654 = vector.broadcast %653 : f32 to vector<8x128xf32>
    %655 = arith.mulf %652, %654 : vector<8x128xf32>
    %656 = arith.addf %650, %655 : vector<8x128xf32>
    %cst_307 = arith.constant 0.000000e+00 : f32
    %657 = vector.broadcast %cst_307 : f32 to vector<8x128xf32>
    %658 = arith.maximumf %589, %657 : vector<8x128xf32>
    %c4_308 = arith.constant 4 : index
    %659 = memref.load %arg7[%c4_308] : memref<16xf32, #tpu.memory_space<smem>>
    %660 = vector.broadcast %659 : f32 to vector<8x128xf32>
    %661 = arith.mulf %658, %660 : vector<8x128xf32>
    %662 = arith.addf %656, %661 : vector<8x128xf32>
    %cst_309 = arith.constant 0.000000e+00 : f32
    %663 = vector.broadcast %cst_309 : f32 to vector<8x128xf32>
    %664 = arith.maximumf %593, %663 : vector<8x128xf32>
    %c5_310 = arith.constant 5 : index
    %665 = memref.load %arg7[%c5_310] : memref<16xf32, #tpu.memory_space<smem>>
    %666 = vector.broadcast %665 : f32 to vector<8x128xf32>
    %667 = arith.mulf %664, %666 : vector<8x128xf32>
    %668 = arith.addf %662, %667 : vector<8x128xf32>
    %cst_311 = arith.constant 0.000000e+00 : f32
    %669 = vector.broadcast %cst_311 : f32 to vector<8x128xf32>
    %670 = arith.maximumf %597, %669 : vector<8x128xf32>
    %c6_312 = arith.constant 6 : index
    %671 = memref.load %arg7[%c6_312] : memref<16xf32, #tpu.memory_space<smem>>
    %672 = vector.broadcast %671 : f32 to vector<8x128xf32>
    %673 = arith.mulf %670, %672 : vector<8x128xf32>
    %674 = arith.addf %668, %673 : vector<8x128xf32>
    %cst_313 = arith.constant 0.000000e+00 : f32
    %675 = vector.broadcast %cst_313 : f32 to vector<8x128xf32>
    %676 = arith.maximumf %601, %675 : vector<8x128xf32>
    %c7_314 = arith.constant 7 : index
    %677 = memref.load %arg7[%c7_314] : memref<16xf32, #tpu.memory_space<smem>>
    %678 = vector.broadcast %677 : f32 to vector<8x128xf32>
    %679 = arith.mulf %676, %678 : vector<8x128xf32>
    %680 = arith.addf %674, %679 : vector<8x128xf32>
    %cst_315 = arith.constant 0.000000e+00 : f32
    %681 = vector.broadcast %cst_315 : f32 to vector<8x128xf32>
    %682 = arith.maximumf %605, %681 : vector<8x128xf32>
    %c8_316 = arith.constant 8 : index
    %683 = memref.load %arg7[%c8_316] : memref<16xf32, #tpu.memory_space<smem>>
    %684 = vector.broadcast %683 : f32 to vector<8x128xf32>
    %685 = arith.mulf %682, %684 : vector<8x128xf32>
    %686 = arith.addf %680, %685 : vector<8x128xf32>
    %cst_317 = arith.constant 0.000000e+00 : f32
    %687 = vector.broadcast %cst_317 : f32 to vector<8x128xf32>
    %688 = arith.maximumf %609, %687 : vector<8x128xf32>
    %c9_318 = arith.constant 9 : index
    %689 = memref.load %arg7[%c9_318] : memref<16xf32, #tpu.memory_space<smem>>
    %690 = vector.broadcast %689 : f32 to vector<8x128xf32>
    %691 = arith.mulf %688, %690 : vector<8x128xf32>
    %692 = arith.addf %686, %691 : vector<8x128xf32>
    %cst_319 = arith.constant 0.000000e+00 : f32
    %693 = vector.broadcast %cst_319 : f32 to vector<8x128xf32>
    %694 = arith.maximumf %613, %693 : vector<8x128xf32>
    %c10_320 = arith.constant 10 : index
    %695 = memref.load %arg7[%c10_320] : memref<16xf32, #tpu.memory_space<smem>>
    %696 = vector.broadcast %695 : f32 to vector<8x128xf32>
    %697 = arith.mulf %694, %696 : vector<8x128xf32>
    %698 = arith.addf %692, %697 : vector<8x128xf32>
    %cst_321 = arith.constant 0.000000e+00 : f32
    %699 = vector.broadcast %cst_321 : f32 to vector<8x128xf32>
    %700 = arith.maximumf %617, %699 : vector<8x128xf32>
    %c11_322 = arith.constant 11 : index
    %701 = memref.load %arg7[%c11_322] : memref<16xf32, #tpu.memory_space<smem>>
    %702 = vector.broadcast %701 : f32 to vector<8x128xf32>
    %703 = arith.mulf %700, %702 : vector<8x128xf32>
    %704 = arith.addf %698, %703 : vector<8x128xf32>
    %cst_323 = arith.constant 0.000000e+00 : f32
    %705 = vector.broadcast %cst_323 : f32 to vector<8x128xf32>
    %706 = arith.maximumf %621, %705 : vector<8x128xf32>
    %c12_324 = arith.constant 12 : index
    %707 = memref.load %arg7[%c12_324] : memref<16xf32, #tpu.memory_space<smem>>
    %708 = vector.broadcast %707 : f32 to vector<8x128xf32>
    %709 = arith.mulf %706, %708 : vector<8x128xf32>
    %710 = arith.addf %704, %709 : vector<8x128xf32>
    %cst_325 = arith.constant 0.000000e+00 : f32
    %711 = vector.broadcast %cst_325 : f32 to vector<8x128xf32>
    %712 = arith.maximumf %625, %711 : vector<8x128xf32>
    %c13_326 = arith.constant 13 : index
    %713 = memref.load %arg7[%c13_326] : memref<16xf32, #tpu.memory_space<smem>>
    %714 = vector.broadcast %713 : f32 to vector<8x128xf32>
    %715 = arith.mulf %712, %714 : vector<8x128xf32>
    %716 = arith.addf %710, %715 : vector<8x128xf32>
    %cst_327 = arith.constant 0.000000e+00 : f32
    %717 = vector.broadcast %cst_327 : f32 to vector<8x128xf32>
    %718 = arith.maximumf %629, %717 : vector<8x128xf32>
    %c14_328 = arith.constant 14 : index
    %719 = memref.load %arg7[%c14_328] : memref<16xf32, #tpu.memory_space<smem>>
    %720 = vector.broadcast %719 : f32 to vector<8x128xf32>
    %721 = arith.mulf %718, %720 : vector<8x128xf32>
    %722 = arith.addf %716, %721 : vector<8x128xf32>
    %cst_329 = arith.constant 0.000000e+00 : f32
    %723 = vector.broadcast %cst_329 : f32 to vector<8x128xf32>
    %724 = arith.maximumf %633, %723 : vector<8x128xf32>
    %c15_330 = arith.constant 15 : index
    %725 = memref.load %arg7[%c15_330] : memref<16xf32, #tpu.memory_space<smem>>
    %726 = vector.broadcast %725 : f32 to vector<8x128xf32>
    %727 = arith.mulf %724, %726 : vector<8x128xf32>
    %728 = arith.addf %722, %727 : vector<8x128xf32>
    %c0_331 = arith.constant 0 : index
    %729 = memref.load %arg8[%c0_331] : memref<1xf32, #tpu.memory_space<smem>>
    %730 = vector.broadcast %729 : f32 to vector<8x128xf32>
    %731 = arith.addf %728, %730 : vector<8x128xf32>
    %c0_332 = arith.constant 0 : index
    %c0_333 = arith.constant 0 : index
    %732 = vector.load %arg9[%c0_332, %c0_333] : memref<8x128xf32, #tpu.memory_space<vmem>>, vector<8x128xf32>
    tpu.vector_store %arg9[%c0_332, %c0_333], %731 {strides = array<i32>} : memref<8x128xf32, #tpu.memory_space<vmem>>, vector<8x128xf32>,
    return
  }
  func.func @transform_0(%arg0: i32) -> (i32, i32) {
    %c0_i32 = arith.constant 0 : i32
    %c0_i32_0 = arith.constant 0 : i32
    return %arg0, %c0_i32 : i32, i32
  }
  func.func @transform_1(%arg0: i32) -> (i32, i32) {
    %c0_i32 = arith.constant 0 : i32
    %c0_i32_0 = arith.constant 0 : i32
    return %arg0, %c0_i32 : i32, i32
  }
  func.func @transform_2(%arg0: i32) -> (i32, i32) {
    %c0_i32 = arith.constant 0 : i32
    %c0_i32_0 = arith.constant 0 : i32
    %c0_i32_1 = arith.constant 0 : i32
    return %c0_i32, %c0_i32_0 : i32, i32
  }
  func.func @transform_3(%arg0: i32) -> i32 {
    %c0_i32 = arith.constant 0 : i32
    %c0_i32_0 = arith.constant 0 : i32
    return %c0_i32 : i32
  }
  func.func @transform_4(%arg0: i32) -> (i32, i32) {
    %c0_i32 = arith.constant 0 : i32
    %c0_i32_0 = arith.constant 0 : i32
    %c0_i32_1 = arith.constant 0 : i32
    return %c0_i32, %c0_i32_0 : i32, i32
  }
  func.func @transform_5(%arg0: i32) -> i32 {
    %c0_i32 = arith.constant 0 : i32
    %c0_i32_0 = arith.constant 0 : i32
    return %c0_i32 : i32
  }
  func.func @transform_6(%arg0: i32) -> i32 {
    %c0_i32 = arith.constant 0 : i32
    %c0_i32_0 = arith.constant 0 : i32
    return %c0_i32 : i32
  }
  func.func @transform_7(%arg0: i32) -> i32 {
    %c0_i32 = arith.constant 0 : i32
    %c0_i32_0 = arith.constant 0 : i32
    return %c0_i32 : i32
  }
  func.func @transform_8(%arg0: i32) -> (i32, i32) {
    %c0_i32 = arith.constant 0 : i32
    %c0_i32_0 = arith.constant 0 : i32
    return %arg0, %c0_i32 : i32, i32
  }
}

</mosaic_0001>

<llo_original>
// kernel: tpu_custom_call.1
$region0: #{tpu_custom_call.1}
  #allocation0 [shape = 'u32[]', space=smem, size = 0x4, offset = 0x4, fixed_abs, tag = 'smem constant byte address 0x4 - core index']
  #allocation1 [shape = 'u32[144,128]{1,0:T(1,128)}', space=vmem, size = 0x12000, scoped, tag = 'internal scratch']
  #allocation2 [shape = 'f32[1]{0:T(128)S(6)}', space=smem, size = 0x200, scoped, tag = 'scoped memory for tpu_custom_call.1']
  %s0 = inlined_call_operand.hbm [shape: f32[8,128], index: 0, kind: input, shape index: {}]
  %s1 = inlined_call_operand.hbm [shape: f32[8,128], index: 1, kind: input, shape index: {}]
  %s2 = inlined_call_operand.vmem [shape: f32[2,8], index: 2, kind: input, shape index: {}]
  %s3 = inlined_call_operand.vmem [shape: f32[8], index: 3, kind: input, shape index: {}]
  %s4 = inlined_call_operand.vmem [shape: f32[8,16], index: 4, kind: input, shape index: {}]
  %s5 = inlined_call_operand.vmem [shape: f32[16], index: 5, kind: input, shape index: {}]
  %s6 = inlined_call_operand.vmem [shape: f32[16], index: 6, kind: input, shape index: {}]
  %s7 = inlined_call_operand.<no memory space> [shape: f32[1], index: 7, kind: input, shape index: {}]
  %s8 = inlined_call_operand.hbm [shape: f32[8,128], index: 8, kind: output, shape index: {}]
  %s9 = sld [smem:[#allocation0]]
  $region70: #{tpu_custom_call.1} parent=0
    _
  %s11 = ssub.s32 1, %s9
  %s12 = scalar_select 0, %s11, %s9
  %13 = sst [smem:[#allocation2]] %s7
  $region1: #{tpu_custom_call.1} parent=0
    #allocation3 [shape = 'u8[4096]{0}', space=vmem, size = 0x1000, scoped, tag = 'input window, operand 0, single buffered']
    #allocation4 [shape = 's32[1]{0}', space=sflag, size = 0x4, scoped, tag = 'scoped memory for tpu_custom_call.1']
    #allocation5 [shape = 's32[1]{0}', space=sflag, size = 0x4, scoped, tag = 'scoped memory for tpu_custom_call.1']
    #allocation6 [shape = 's32[1]{0}', space=sflag, size = 0x4, scoped, tag = 'scoped memory for tpu_custom_call.1']
    #allocation7 [shape = 'u8[4096]{0}', space=vmem, size = 0x1000, scoped, tag = 'input window, operand 1, single buffered']
    #allocation8 [shape = 's32[1]{0}', space=sflag, size = 0x4, scoped, tag = 'scoped memory for tpu_custom_call.1']
    #allocation9 [shape = 'u8[1024]{0}', space=smem, size = 0x400, scoped, tag = 'input window, operand 2, single buffered']
    #allocation10 [shape = 'u8[512]{0}', space=smem, size = 0x200, scoped, tag = 'input window, operand 3, single buffered']
    #allocation11 [shape = 's32[1]{0}', space=sflag, size = 0x4, scoped, tag = 'scoped memory for tpu_custom_call.1']
    #allocation12 [shape = 'u8[4096]{0}', space=smem, size = 0x1000, scoped, tag = 'input window, operand 4, single buffered']
    #allocation13 [shape = 'u8[512]{0}', space=smem, size = 0x200, scoped, tag = 'input window, operand 5, single buffered']
    #allocation14 [shape = 's32[1]{0}', space=sflag, size = 0x4, scoped, tag = 'scoped memory for tpu_custom_call.1']
    #allocation15 [shape = 'u8[512]{0}', space=smem, size = 0x200, scoped, tag = 'input window, operand 6, single buffered']
    #allocation16 [shape = 'u8[4096]{0}', space=vmem, size = 0x1000, scoped, tag = 'output window, operand 0, single buffered']
    %14 = vsyncpa [#allocation4], 0
    %15 = vsyncpa [#allocation8], 0
    %16 = vsyncpa [#allocation6], 0
    %17 = vsyncpa [#allocation11], 0
    %18 = vsyncpa [#allocation14], 0
    %19 = vsyncpa [#allocation5], 0
    // Predicated region
    $region2: #{tpu_custom_call.1} parent=1 // pred_check
      _
    $region3: #{tpu_custom_call.1} parent=1 // pred_check_branch
      %21 = sbr.rel (0) target = $region5
    $region4: #{tpu_custom_call.1} parent=1 // pred_region
      %s23 = ssub.s32 128, 128
      %24 = vsyncadd [#allocation4], %s23
      %s26 = sshll.u32 [#allocation3], 4
      %s27 = int_to_ptr.vmem [resolvable:$true] %s26
      %29 = dma.hbm_to_vmem [thread:$0]  %s0, 128, %s27, [#allocation4]
    $region5: #{tpu_custom_call.1} parent=1 // pred_fallthru
      _
    // Predicated region
    $region6: #{tpu_custom_call.1} parent=1 // pred_check
      _
    $region7: #{tpu_custom_call.1} parent=1 // pred_check_branch
      %31 = sbr.rel (0) target = $region9
    $region8: #{tpu_custom_call.1} parent=1 // pred_region
      %s33 = ssub.s32 128, 128
      %34 = vsyncadd [#allocation8], %s33
      %s36 = sshll.u32 [#allocation7], 4
      %s37 = int_to_ptr.vmem [resolvable:$true] %s36
      %39 = dma.hbm_to_vmem [thread:$0]  %s1, 128, %s37, [#allocation8]
    $region9: #{tpu_custom_call.1} parent=1 // pred_fallthru
      _
    // Predicated region
    $region10: #{tpu_custom_call.1} parent=1 // pred_check
      _
    $region11: #{tpu_custom_call.1} parent=1 // pred_check_branch
      %41 = sbr.rel (0) target = $region13
    $region12: #{tpu_custom_call.1} parent=1 // pred_region
      %s43 = ssub.s32 32, 32
      %44 = vsyncadd [#allocation6], %s43
      %s46 = sshll.u32 %s2, 4
      %s47 = int_to_ptr.vmem [resolvable:$true] %s46
      %49 = dma.vmem_to_smem %s47, 32, [#allocation9], [#allocation6]
    $region13: #{tpu_custom_call.1} parent=1 // pred_fallthru
      _
    // Predicated region
    $region14: #{tpu_custom_call.1} parent=1 // pred_check
      _
    $region15: #{tpu_custom_call.1} parent=1 // pred_check_branch
      %51 = sbr.rel (0) target = $region17
    $region16: #{tpu_custom_call.1} parent=1 // pred_region
      %s53 = ssub.s32 16, 16
      %54 = vsyncadd [#allocation11], %s53
      %s56 = sshll.u32 %s3, 4
      %s57 = int_to_ptr.vmem [resolvable:$true] %s56
      %59 = dma.vmem_to_smem %s57, 16, [#allocation10], [#allocation11]
    $region17: #{tpu_custom_call.1} parent=1 // pred_fallthru
      _
    // Predicated region
    $region18: #{tpu_custom_call.1} parent=1 // pred_check
      _
    $region19: #{tpu_custom_call.1} parent=1 // pred_check_branch
      %61 = sbr.rel (0) target = $region21
    $region20: #{tpu_custom_call.1} parent=1 // pred_region
      %s63 = ssub.s32 128, 128
      %64 = vsyncadd [#allocation11], %s63
      %s66 = sshll.u32 %s4, 4
      %s67 = int_to_ptr.vmem [resolvable:$true] %s66
      %69 = dma.vmem_to_smem %s67, 128, [#allocation12], [#allocation11]
    $region21: #{tpu_custom_call.1} parent=1 // pred_fallthru
      _
    // Predicated region
    $region22: #{tpu_custom_call.1} parent=1 // pred_check
      _
    $region23: #{tpu_custom_call.1} parent=1 // pred_check_branch
      %71 = sbr.rel (0) target = $region25
    $region24: #{tpu_custom_call.1} parent=1 // pred_region
      %s73 = ssub.s32 16, 16
      %74 = vsyncadd [#allocation14], %s73
      %s76 = sshll.u32 %s5, 4
      %s77 = int_to_ptr.vmem [resolvable:$true] %s76
      %79 = dma.vmem_to_smem %s77, 16, [#allocation13], [#allocation14]
    $region25: #{tpu_custom_call.1} parent=1 // pred_fallthru
      _
    // Predicated region
    $region26: #{tpu_custom_call.1} parent=1 // pred_check
      _
    $region27: #{tpu_custom_call.1} parent=1 // pred_check_branch
      %81 = sbr.rel (0) target = $region29
    $region28: #{tpu_custom_call.1} parent=1 // pred_region
      %s83 = ssub.s32 16, 16
      %84 = vsyncadd [#allocation14], %s83
      %s86 = sshll.u32 %s6, 4
      %s87 = int_to_ptr.vmem [resolvable:$true] %s86
      %89 = dma.vmem_to_smem %s87, 16, [#allocation15], [#allocation14]
    $region29: #{tpu_custom_call.1} parent=1 // pred_fallthru
      _
    // Predicated region
    $region30: #{tpu_custom_call.1} parent=1 // pred_check
      _
    $region31: #{tpu_custom_call.1} parent=1 // pred_check_branch
      %91 = sbr.rel (0) target = $region33
    $region32: #{tpu_custom_call.1} parent=1 // pred_region
      _
    $region33: #{tpu_custom_call.1} parent=1 // pred_fallthru
      _
    // Predicated region
    $region34: #{tpu_custom_call.1} parent=1 // pred_check
      _
    $region35: #{tpu_custom_call.1} parent=1 // pred_check_branch
      %93 = sbr.rel (0) target = $region37
    $region36: #{tpu_custom_call.1} parent=1 // pred_region
      %94 = dma.done [#allocation4], 128
    $region37: #{tpu_custom_call.1} parent=1 // pred_fallthru
      _
    // Predicated region
    $region38: #{tpu_custom_call.1} parent=1 // pred_check
      _
    $region39: #{tpu_custom_call.1} parent=1 // pred_check_branch
      %96 = sbr.rel (0) target = $region41
    $region40: #{tpu_custom_call.1} parent=1 // pred_region
      %97 = dma.done [#allocation8], 128
    $region41: #{tpu_custom_call.1} parent=1 // pred_fallthru
      _
    // Predicated region
    $region42: #{tpu_custom_call.1} parent=1 // pred_check
      _
    $region43: #{tpu_custom_call.1} parent=1 // pred_check_branch
      %99 = sbr.rel (0) target = $region45
    $region44: #{tpu_custom_call.1} parent=1 // pred_region
      %100 = dma.done [#allocation6], 32
    $region45: #{tpu_custom_call.1} parent=1 // pred_fallthru
      _
    // Predicated region
    $region46: #{tpu_custom_call.1} parent=1 // pred_check
      _
    $region47: #{tpu_custom_call.1} parent=1 // pred_check_branch
      %102 = sbr.rel (0) target = $region49
    $region48: #{tpu_custom_call.1} parent=1 // pred_region
      %103 = dma.done [#allocation11], 16
    $region49: #{tpu_custom_call.1} parent=1 // pred_fallthru
      _
    // Predicated region
    $region50: #{tpu_custom_call.1} parent=1 // pred_check
      _
    $region51: #{tpu_custom_call.1} parent=1 // pred_check_branch
      %105 = sbr.rel (0) target = $region53
    $region52: #{tpu_custom_call.1} parent=1 // pred_region
      %106 = dma.done [#allocation11], 128
    $region53: #{tpu_custom_call.1} parent=1 // pred_fallthru
      _
    // Predicated region
    $region54: #{tpu_custom_call.1} parent=1 // pred_check
      _
    $region55: #{tpu_custom_call.1} parent=1 // pred_check_branch
      %108 = sbr.rel (0) target = $region57
    $region56: #{tpu_custom_call.1} parent=1 // pred_region
      %109 = dma.done [#allocation14], 16
    $region57: #{tpu_custom_call.1} parent=1 // pred_fallthru
      _
    // Predicated region
    $region58: #{tpu_custom_call.1} parent=1 // pred_check
      _
    $region59: #{tpu_custom_call.1} parent=1 // pred_check_branch
      %111 = sbr.rel (0) target = $region61
    $region60: #{tpu_custom_call.1} parent=1 // pred_region
      %112 = dma.done [#allocation14], 16
    $region61: #{tpu_custom_call.1} parent=1 // pred_fallthru
      _
    %113 = sfence
    %v114 = vld [vmem:[#allocation3] sm:$0xff]
    %v115 = vld [vmem:[#allocation7] sm:$0xff]
    %s116 = sld [smem:[#allocation9]]
    %v117 = vstv %s116
    %v118 = vmul.f32 %v114, %v117
    %s119 = sld [smem:[#allocation9 + $0x80]]
    %v120 = vstv %s119
    %v121 = vmul.f32 %v115, %v120
    %v122 = vadd.f32 %v118, %v121
    %s123 = sld [smem:[#allocation10]]
    %v124 = vstv %s123
    %v125 = vadd.f32 %v122, %v124
    %v126 = vtanh.pop %v125
    %s127 = sld [smem:[#allocation13]]
    %s128 = sld [smem:[#allocation12]]
    %v129 = vstv %s128
    %v130 = vmul.f32 %v126, %v129
    %v131 = vstv %s127
    %v132 = vadd.f32 %v131, %v130
    %s133 = sld [smem:[#allocation13 + $0x1]]
    %s134 = sld [smem:[#allocation12 + $0x1]]
    %v135 = vstv %s134
    %v136 = vmul.f32 %v126, %v135
    %v137 = vstv %s133
    %v138 = vadd.f32 %v137, %v136
    %s139 = sld [smem:[#allocation13 + $0x2]]
    %s140 = sld [smem:[#allocation12 + $0x2]]
    %v141 = vstv %s140
    %v142 = vmul.f32 %v126, %v141
    %v143 = vstv %s139
    %v144 = vadd.f32 %v143, %v142
    %s145 = sld [smem:[#allocation13 + $0x3]]
    %s146 = sld [smem:[#allocation12 + $0x3]]
    %v147 = vstv %s146
    %v148 = vmul.f32 %v126, %v147
    %v149 = vstv %s145
    %v150 = vadd.f32 %v149, %v148
    %s151 = sld [smem:[#allocation13 + $0x4]]
    %s152 = sld [smem:[#allocation12 + $0x4]]
    %v153 = vstv %s152
    %v154 = vmul.f32 %v126, %v153
    %v155 = vstv %s151
    %v156 = vadd.f32 %v155, %v154
    %s157 = sld [smem:[#allocation13 + $0x5]]
    %s158 = sld [smem:[#allocation12 + $0x5]]
    %v159 = vstv %s158
    %v160 = vmul.f32 %v126, %v159
    %v161 = vstv %s157
    %v162 = vadd.f32 %v161, %v160
    %s163 = sld [smem:[#allocation13 + $0x6]]
    %s164 = sld [smem:[#allocation12 + $0x6]]
    %v165 = vstv %s164
    %v166 = vmul.f32 %v126, %v165
    %v167 = vstv %s163
    %v168 = vadd.f32 %v167, %v166
    %s169 = sld [smem:[#allocation13 + $0x7]]
    %s170 = sld [smem:[#allocation12 + $0x7]]
    %v171 = vstv %s170
    %v172 = vmul.f32 %v126, %v171
    %v173 = vstv %s169
    %v174 = vadd.f32 %v173, %v172
    %s175 = sld [smem:[#allocation13 + $0x8]]
    %s176 = sld [smem:[#allocation12 + $0x8]]
    %v177 = vstv %s176
    %v178 = vmul.f32 %v126, %v177
    %v179 = vstv %s175
    %v180 = vadd.f32 %v179, %v178
    %s181 = sld [smem:[#allocation13 + $0x9]]
    %s182 = sld [smem:[#allocation12 + $0x9]]
    %v183 = vstv %s182
    %v184 = vmul.f32 %v126, %v183
    %v185 = vstv %s181
    %v186 = vadd.f32 %v185, %v184
    %s187 = sld [smem:[#allocation13 + $0xa]]
    %s188 = sld [smem:[#allocation12 + $0xa]]
    %v189 = vstv %s188
    %v190 = vmul.f32 %v126, %v189
    %v191 = vstv %s187
    %v192 = vadd.f32 %v191, %v190
    %s193 = sld [smem:[#allocation13 + $0xb]]
    %s194 = sld [smem:[#allocation12 + $0xb]]
    %v195 = vstv %s194
    %v196 = vmul.f32 %v126, %v195
    %v197 = vstv %s193
    %v198 = vadd.f32 %v197, %v196
    %s199 = sld [smem:[#allocation13 + $0xc]]
    %s200 = sld [smem:[#allocation12 + $0xc]]
    %v201 = vstv %s200
    %v202 = vmul.f32 %v126, %v201
    %v203 = vstv %s199
    %v204 = vadd.f32 %v203, %v202
    %s205 = sld [smem:[#allocation13 + $0xd]]
    %s206 = sld [smem:[#allocation12 + $0xd]]
    %v207 = vstv %s206
    %v208 = vmul.f32 %v126, %v207
    %v209 = vstv %s205
    %v210 = vadd.f32 %v209, %v208
    %s211 = sld [smem:[#allocation13 + $0xe]]
    %s212 = sld [smem:[#allocation12 + $0xe]]
    %v213 = vstv %s212
    %v214 = vmul.f32 %v126, %v213
    %v215 = vstv %s211
    %v216 = vadd.f32 %v215, %v214
    %s217 = sld [smem:[#allocation13 + $0xf]]
    %s218 = sld [smem:[#allocation12 + $0xf]]
    %v219 = vstv %s218
    %v220 = vmul.f32 %v126, %v219
    %v221 = vstv %s217
    %v222 = vadd.f32 %v221, %v220
    %s223 = sld [smem:[#allocation9 + $0x1]]
    %v224 = vstv %s223
    %v225 = vmul.f32 %v114, %v224
    %s226 = sld [smem:[#allocation9 + $0x81]]
    %v227 = vstv %s226
    %v228 = vmul.f32 %v115, %v227
    %v229 = vadd.f32 %v225, %v228
    %s230 = sld [smem:[#allocation10 + $0x1]]
    %v231 = vstv %s230
    %v232 = vadd.f32 %v229, %v231
    %v233 = vtanh.pop %v232
    %s234 = sld [smem:[#allocation12 + $0x80]]
    %v235 = vstv %s234
    %v236 = vmul.f32 %v233, %v235
    %v237 = vadd.f32 %v132, %v236
    %s238 = sld [smem:[#allocation12 + $0x81]]
    %v239 = vstv %s238
    %v240 = vmul.f32 %v233, %v239
    %v241 = vadd.f32 %v138, %v240
    %s242 = sld [smem:[#allocation12 + $0x82]]
    %v243 = vstv %s242
    %v244 = vmul.f32 %v233, %v243
    %v245 = vadd.f32 %v144, %v244
    %s246 = sld [smem:[#allocation12 + $0x83]]
    %v247 = vstv %s246
    %v248 = vmul.f32 %v233, %v247
    %v249 = vadd.f32 %v150, %v248
    %s250 = sld [smem:[#allocation12 + $0x84]]
    %v251 = vstv %s250
    %v252 = vmul.f32 %v233, %v251
    %v253 = vadd.f32 %v156, %v252
    %s254 = sld [smem:[#allocation12 + $0x85]]
    %v255 = vstv %s254
    %v256 = vmul.f32 %v233, %v255
    %v257 = vadd.f32 %v162, %v256
    %s258 = sld [smem:[#allocation12 + $0x86]]
    %v259 = vstv %s258
    %v260 = vmul.f32 %v233, %v259
    %v261 = vadd.f32 %v168, %v260
    %s262 = sld [smem:[#allocation12 + $0x87]]
    %v263 = vstv %s262
    %v264 = vmul.f32 %v233, %v263
    %v265 = vadd.f32 %v174, %v264
    %s266 = sld [smem:[#allocation12 + $0x88]]
    %v267 = vstv %s266
    %v268 = vmul.f32 %v233, %v267
    %v269 = vadd.f32 %v180, %v268
    %s270 = sld [smem:[#allocation12 + $0x89]]
    %v271 = vstv %s270
    %v272 = vmul.f32 %v233, %v271
    %v273 = vadd.f32 %v186, %v272
    %s274 = sld [smem:[#allocation12 + $0x8a]]
    %v275 = vstv %s274
    %v276 = vmul.f32 %v233, %v275
    %v277 = vadd.f32 %v192, %v276
    %s278 = sld [smem:[#allocation12 + $0x8b]]
    %v279 = vstv %s278
    %v280 = vmul.f32 %v233, %v279
    %v281 = vadd.f32 %v198, %v280
    %s282 = sld [smem:[#allocation12 + $0x8c]]
    %v283 = vstv %s282
    %v284 = vmul.f32 %v233, %v283
    %v285 = vadd.f32 %v204, %v284
    %s286 = sld [smem:[#allocation12 + $0x8d]]
    %v287 = vstv %s286
    %v288 = vmul.f32 %v233, %v287
    %v289 = vadd.f32 %v210, %v288
    %s290 = sld [smem:[#allocation12 + $0x8e]]
    %v291 = vstv %s290
    %v292 = vmul.f32 %v233, %v291
    %v293 = vadd.f32 %v216, %v292
    %s294 = sld [smem:[#allocation12 + $0x8f]]
    %v295 = vstv %s294
    %v296 = vmul.f32 %v233, %v295
    %v297 = vadd.f32 %v222, %v296
    %s298 = sld [smem:[#allocation9 + $0x2]]
    %v299 = vstv %s298
    %v300 = vmul.f32 %v114, %v299
    %s301 = sld [smem:[#allocation9 + $0x82]]
    %v302 = vstv %s301
    %v303 = vmul.f32 %v115, %v302
    %v304 = vadd.f32 %v300, %v303
    %s305 = sld [smem:[#allocation10 + $0x2]]
    %v306 = vstv %s305
    %v307 = vadd.f32 %v304, %v306
    %v308 = vtanh.pop %v307
    %s309 = sld [smem:[#allocation12 + $0x100]]
    %v310 = vstv %s309
    %v311 = vmul.f32 %v308, %v310
    %v312 = vadd.f32 %v237, %v311
    %s313 = sld [smem:[#allocation12 + $0x101]]
    %v314 = vstv %s313
    %v315 = vmul.f32 %v308, %v314
    %v316 = vadd.f32 %v241, %v315
    %s317 = sld [smem:[#allocation12 + $0x102]]
    %v318 = vstv %s317
    %v319 = vmul.f32 %v308, %v318
    %v320 = vadd.f32 %v245, %v319
    %s321 = sld [smem:[#allocation12 + $0x103]]
    %v322 = vstv %s321
    %v323 = vmul.f32 %v308, %v322
    %v324 = vadd.f32 %v249, %v323
    %s325 = sld [smem:[#allocation12 + $0x104]]
    %v326 = vstv %s325
    %v327 = vmul.f32 %v308, %v326
    %v328 = vadd.f32 %v253, %v327
    %s329 = sld [smem:[#allocation12 + $0x105]]
    %v330 = vstv %s329
    %v331 = vmul.f32 %v308, %v330
    %v332 = vadd.f32 %v257, %v331
    %s333 = sld [smem:[#allocation12 + $0x106]]
    %v334 = vstv %s333
    %v335 = vmul.f32 %v308, %v334
    %v336 = vadd.f32 %v261, %v335
    %s337 = sld [smem:[#allocation12 + $0x107]]
    %v338 = vstv %s337
    %v339 = vmul.f32 %v308, %v338
    %v340 = vadd.f32 %v265, %v339
    %s341 = sld [smem:[#allocation12 + $0x108]]
    %v342 = vstv %s341
    %v343 = vmul.f32 %v308, %v342
    %v344 = vadd.f32 %v269, %v343
    %s345 = sld [smem:[#allocation12 + $0x109]]
    %v346 = vstv %s345
    %v347 = vmul.f32 %v308, %v346
    %v348 = vadd.f32 %v273, %v347
    %s349 = sld [smem:[#allocation12 + $0x10a]]
    %v350 = vstv %s349
    %v351 = vmul.f32 %v308, %v350
    %v352 = vadd.f32 %v277, %v351
    %s353 = sld [smem:[#allocation12 + $0x10b]]
    %v354 = vstv %s353
    %v355 = vmul.f32 %v308, %v354
    %v356 = vadd.f32 %v281, %v355
    %s357 = sld [smem:[#allocation12 + $0x10c]]
    %v358 = vstv %s357
    %v359 = vmul.f32 %v308, %v358
    %v360 = vadd.f32 %v285, %v359
    %s361 = sld [smem:[#allocation12 + $0x10d]]
    %v362 = vstv %s361
    %v363 = vmul.f32 %v308, %v362
    %v364 = vadd.f32 %v289, %v363
    %s365 = sld [smem:[#allocation12 + $0x10e]]
    %v366 = vstv %s365
    %v367 = vmul.f32 %v308, %v366
    %v368 = vadd.f32 %v293, %v367
    %s369 = sld [smem:[#allocation12 + $0x10f]]
    %v370 = vstv %s369
    %v371 = vmul.f32 %v308, %v370
    %v372 = vadd.f32 %v297, %v371
    %s373 = sld [smem:[#allocation9 + $0x3]]
    %v374 = vstv %s373
    %v375 = vmul.f32 %v114, %v374
    %s376 = sld [smem:[#allocation9 + $0x83]]
    %v377 = vstv %s376
    %v378 = vmul.f32 %v115, %v377
    %v379 = vadd.f32 %v375, %v378
    %s380 = sld [smem:[#allocation10 + $0x3]]
    %v381 = vstv %s380
    %v382 = vadd.f32 %v379, %v381
    %v383 = vtanh.pop %v382
    %s384 = sld [smem:[#allocation12 + $0x180]]
    %v385 = vstv %s384
    %v386 = vmul.f32 %v383, %v385
    %v387 = vadd.f32 %v312, %v386
    %s388 = sld [smem:[#allocation12 + $0x181]]
    %v389 = vstv %s388
    %v390 = vmul.f32 %v383, %v389
    %v391 = vadd.f32 %v316, %v390
    %s392 = sld [smem:[#allocation12 + $0x182]]
    %v393 = vstv %s392
    %v394 = vmul.f32 %v383, %v393
    %v395 = vadd.f32 %v320, %v394
    %s396 = sld [smem:[#allocation12 + $0x183]]
    %v397 = vstv %s396
    %v398 = vmul.f32 %v383, %v397
    %v399 = vadd.f32 %v324, %v398
    %s400 = sld [smem:[#allocation12 + $0x184]]
    %v401 = vstv %s400
    %v402 = vmul.f32 %v383, %v401
    %v403 = vadd.f32 %v328, %v402
    %s404 = sld [smem:[#allocation12 + $0x185]]
    %v405 = vstv %s404
    %v406 = vmul.f32 %v383, %v405
    %v407 = vadd.f32 %v332, %v406
    %s408 = sld [smem:[#allocation12 + $0x186]]
    %v409 = vstv %s408
    %v410 = vmul.f32 %v383, %v409
    %v411 = vadd.f32 %v336, %v410
    %s412 = sld [smem:[#allocation12 + $0x187]]
    %v413 = vstv %s412
    %v414 = vmul.f32 %v383, %v413
    %v415 = vadd.f32 %v340, %v414
    %s416 = sld [smem:[#allocation12 + $0x188]]
    %v417 = vstv %s416
    %v418 = vmul.f32 %v383, %v417
    %v419 = vadd.f32 %v344, %v418
    %s420 = sld [smem:[#allocation12 + $0x189]]
    %v421 = vstv %s420
    %v422 = vmul.f32 %v383, %v421
    %v423 = vadd.f32 %v348, %v422
    %s424 = sld [smem:[#allocation12 + $0x18a]]
    %v425 = vstv %s424
    %v426 = vmul.f32 %v383, %v425
    %v427 = vadd.f32 %v352, %v426
    %s428 = sld [smem:[#allocation12 + $0x18b]]
    %v429 = vstv %s428
    %v430 = vmul.f32 %v383, %v429
    %v431 = vadd.f32 %v356, %v430
    %s432 = sld [smem:[#allocation12 + $0x18c]]
    %v433 = vstv %s432
    %v434 = vmul.f32 %v383, %v433
    %v435 = vadd.f32 %v360, %v434
    %s436 = sld [smem:[#allocation12 + $0x18d]]
    %v437 = vstv %s436
    %v438 = vmul.f32 %v383, %v437
    %v439 = vadd.f32 %v364, %v438
    %s440 = sld [smem:[#allocation12 + $0x18e]]
    %v441 = vstv %s440
    %v442 = vmul.f32 %v383, %v441
    %v443 = vadd.f32 %v368, %v442
    %s444 = sld [smem:[#allocation12 + $0x18f]]
    %v445 = vstv %s444
    %v446 = vmul.f32 %v383, %v445
    %v447 = vadd.f32 %v372, %v446
    %s448 = sld [smem:[#allocation9 + $0x4]]
    %v449 = vstv %s448
    %v450 = vmul.f32 %v114, %v449
    %s451 = sld [smem:[#allocation9 + $0x84]]
    %v452 = vstv %s451
    %v453 = vmul.f32 %v115, %v452
    %v454 = vadd.f32 %v450, %v453
    %s455 = sld [smem:[#allocation10 + $0x4]]
    %v456 = vstv %s455
    %v457 = vadd.f32 %v454, %v456
    %v458 = vtanh.pop %v457
    %s459 = sld [smem:[#allocation12 + $0x200]]
    %v460 = vstv %s459
    %v461 = vmul.f32 %v458, %v460
    %v462 = vadd.f32 %v387, %v461
    %s463 = sld [smem:[#allocation12 + $0x201]]
    %v464 = vstv %s463
    %v465 = vmul.f32 %v458, %v464
    %v466 = vadd.f32 %v391, %v465
    %s467 = sld [smem:[#allocation12 + $0x202]]
    %v468 = vstv %s467
    %v469 = vmul.f32 %v458, %v468
    %v470 = vadd.f32 %v395, %v469
    %s471 = sld [smem:[#allocation12 + $0x203]]
    %v472 = vstv %s471
    %v473 = vmul.f32 %v458, %v472
    %v474 = vadd.f32 %v399, %v473
    %s475 = sld [smem:[#allocation12 + $0x204]]
    %v476 = vstv %s475
    %v477 = vmul.f32 %v458, %v476
    %v478 = vadd.f32 %v403, %v477
    %s479 = sld [smem:[#allocation12 + $0x205]]
    %v480 = vstv %s479
    %v481 = vmul.f32 %v458, %v480
    %v482 = vadd.f32 %v407, %v481
    %s483 = sld [smem:[#allocation12 + $0x206]]
    %v484 = vstv %s483
    %v485 = vmul.f32 %v458, %v484
    %v486 = vadd.f32 %v411, %v485
    %s487 = sld [smem:[#allocation12 + $0x207]]
    %v488 = vstv %s487
    %v489 = vmul.f32 %v458, %v488
    %v490 = vadd.f32 %v415, %v489
    %s491 = sld [smem:[#allocation12 + $0x208]]
    %v492 = vstv %s491
    %v493 = vmul.f32 %v458, %v492
    %v494 = vadd.f32 %v419, %v493
    %s495 = sld [smem:[#allocation12 + $0x209]]
    %v496 = vstv %s495
    %v497 = vmul.f32 %v458, %v496
    %v498 = vadd.f32 %v423, %v497
    %s499 = sld [smem:[#allocation12 + $0x20a]]
    %v500 = vstv %s499
    %v501 = vmul.f32 %v458, %v500
    %v502 = vadd.f32 %v427, %v501
    %s503 = sld [smem:[#allocation12 + $0x20b]]
    %v504 = vstv %s503
    %v505 = vmul.f32 %v458, %v504
    %v506 = vadd.f32 %v431, %v505
    %s507 = sld [smem:[#allocation12 + $0x20c]]
    %v508 = vstv %s507
    %v509 = vmul.f32 %v458, %v508
    %v510 = vadd.f32 %v435, %v509
    %s511 = sld [smem:[#allocation12 + $0x20d]]
    %v512 = vstv %s511
    %v513 = vmul.f32 %v458, %v512
    %v514 = vadd.f32 %v439, %v513
    %s515 = sld [smem:[#allocation12 + $0x20e]]
    %v516 = vstv %s515
    %v517 = vmul.f32 %v458, %v516
    %v518 = vadd.f32 %v443, %v517
    %s519 = sld [smem:[#allocation12 + $0x20f]]
    %v520 = vstv %s519
    %v521 = vmul.f32 %v458, %v520
    %v522 = vadd.f32 %v447, %v521
    %s523 = sld [smem:[#allocation9 + $0x5]]
    %v524 = vstv %s523
    %v525 = vmul.f32 %v114, %v524
    %s526 = sld [smem:[#allocation9 + $0x85]]
    %v527 = vstv %s526
    %v528 = vmul.f32 %v115, %v527
    %v529 = vadd.f32 %v525, %v528
    %s530 = sld [smem:[#allocation10 + $0x5]]
    %v531 = vstv %s530
    %v532 = vadd.f32 %v529, %v531
    %v533 = vtanh.pop %v532
    %s534 = sld [smem:[#allocation12 + $0x280]]
    %v535 = vstv %s534
    %v536 = vmul.f32 %v533, %v535
    %v537 = vadd.f32 %v462, %v536
    %s538 = sld [smem:[#allocation12 + $0x281]]
    %v539 = vstv %s538
    %v540 = vmul.f32 %v533, %v539
    %v541 = vadd.f32 %v466, %v540
    %s542 = sld [smem:[#allocation12 + $0x282]]
    %v543 = vstv %s542
    %v544 = vmul.f32 %v533, %v543
    %v545 = vadd.f32 %v470, %v544
    %s546 = sld [smem:[#allocation12 + $0x283]]
    %v547 = vstv %s546
    %v548 = vmul.f32 %v533, %v547
    %v549 = vadd.f32 %v474, %v548
    %s550 = sld [smem:[#allocation12 + $0x284]]
    %v551 = vstv %s550
    %v552 = vmul.f32 %v533, %v551
    %v553 = vadd.f32 %v478, %v552
    %s554 = sld [smem:[#allocation12 + $0x285]]
    %v555 = vstv %s554
    %v556 = vmul.f32 %v533, %v555
    %v557 = vadd.f32 %v482, %v556
    %s558 = sld [smem:[#allocation12 + $0x286]]
    %v559 = vstv %s558
    %v560 = vmul.f32 %v533, %v559
    %v561 = vadd.f32 %v486, %v560
    %s562 = sld [smem:[#allocation12 + $0x287]]
    %v563 = vstv %s562
    %v564 = vmul.f32 %v533, %v563
    %v565 = vadd.f32 %v490, %v564
    %s566 = sld [smem:[#allocation12 + $0x288]]
    %v567 = vstv %s566
    %v568 = vmul.f32 %v533, %v567
    %v569 = vadd.f32 %v494, %v568
    %s570 = sld [smem:[#allocation12 + $0x289]]
    %v571 = vstv %s570
    %v572 = vmul.f32 %v533, %v571
    %v573 = vadd.f32 %v498, %v572
    %s574 = sld [smem:[#allocation12 + $0x28a]]
    %v575 = vstv %s574
    %v576 = vmul.f32 %v533, %v575
    %v577 = vadd.f32 %v502, %v576
    %s578 = sld [smem:[#allocation12 + $0x28b]]
    %v579 = vstv %s578
    %v580 = vmul.f32 %v533, %v579
    %v581 = vadd.f32 %v506, %v580
    %s582 = sld [smem:[#allocation12 + $0x28c]]
    %v583 = vstv %s582
    %v584 = vmul.f32 %v533, %v583
    %v585 = vadd.f32 %v510, %v584
    %s586 = sld [smem:[#allocation12 + $0x28d]]
    %v587 = vstv %s586
    %v588 = vmul.f32 %v533, %v587
    %v589 = vadd.f32 %v514, %v588
    %s590 = sld [smem:[#allocation12 + $0x28e]]
    %v591 = vstv %s590
    %v592 = vmul.f32 %v533, %v591
    %v593 = vadd.f32 %v518, %v592
    %s594 = sld [smem:[#allocation12 + $0x28f]]
    %v595 = vstv %s594
    %v596 = vmul.f32 %v533, %v595
    %v597 = vadd.f32 %v522, %v596
    %s598 = sld [smem:[#allocation9 + $0x6]]
    %v599 = vstv %s598
    %v600 = vmul.f32 %v114, %v599
    %s601 = sld [smem:[#allocation9 + $0x86]]
    %v602 = vstv %s601
    %v603 = vmul.f32 %v115, %v602
    %v604 = vadd.f32 %v600, %v603
    %s605 = sld [smem:[#allocation10 + $0x6]]
    %v606 = vstv %s605
    %v607 = vadd.f32 %v604, %v606
    %v608 = vtanh.pop %v607
    %s609 = sld [smem:[#allocation12 + $0x300]]
    %v610 = vstv %s609
    %v611 = vmul.f32 %v608, %v610
    %v612 = vadd.f32 %v537, %v611
    %s613 = sld [smem:[#allocation12 + $0x301]]
    %v614 = vstv %s613
    %v615 = vmul.f32 %v608, %v614
    %v616 = vadd.f32 %v541, %v615
    %s617 = sld [smem:[#allocation12 + $0x302]]
    %v618 = vstv %s617
    %v619 = vmul.f32 %v608, %v618
    %v620 = vadd.f32 %v545, %v619
    %s621 = sld [smem:[#allocation12 + $0x303]]
    %v622 = vstv %s621
    %v623 = vmul.f32 %v608, %v622
    %v624 = vadd.f32 %v549, %v623
    %s625 = sld [smem:[#allocation12 + $0x304]]
    %v626 = vstv %s625
    %v627 = vmul.f32 %v608, %v626
    %v628 = vadd.f32 %v553, %v627
    %s629 = sld [smem:[#allocation12 + $0x305]]
    %v630 = vstv %s629
    %v631 = vmul.f32 %v608, %v630
    %v632 = vadd.f32 %v557, %v631
    %s633 = sld [smem:[#allocation12 + $0x306]]
    %v634 = vstv %s633
    %v635 = vmul.f32 %v608, %v634
    %v636 = vadd.f32 %v561, %v635
    %s637 = sld [smem:[#allocation12 + $0x307]]
    %v638 = vstv %s637
    %v639 = vmul.f32 %v608, %v638
    %v640 = vadd.f32 %v565, %v639
    %s641 = sld [smem:[#allocation12 + $0x308]]
    %v642 = vstv %s641
    %v643 = vmul.f32 %v608, %v642
    %v644 = vadd.f32 %v569, %v643
    %s645 = sld [smem:[#allocation12 + $0x309]]
    %v646 = vstv %s645
    %v647 = vmul.f32 %v608, %v646
    %v648 = vadd.f32 %v573, %v647
    %s649 = sld [smem:[#allocation12 + $0x30a]]
    %v650 = vstv %s649
    %v651 = vmul.f32 %v608, %v650
    %v652 = vadd.f32 %v577, %v651
    %s653 = sld [smem:[#allocation12 + $0x30b]]
    %v654 = vstv %s653
    %v655 = vmul.f32 %v608, %v654
    %v656 = vadd.f32 %v581, %v655
    %s657 = sld [smem:[#allocation12 + $0x30c]]
    %v658 = vstv %s657
    %v659 = vmul.f32 %v608, %v658
    %v660 = vadd.f32 %v585, %v659
    %s661 = sld [smem:[#allocation12 + $0x30d]]
    %v662 = vstv %s661
    %v663 = vmul.f32 %v608, %v662
    %v664 = vadd.f32 %v589, %v663
    %s665 = sld [smem:[#allocation12 + $0x30e]]
    %v666 = vstv %s665
    %v667 = vmul.f32 %v608, %v666
    %v668 = vadd.f32 %v593, %v667
    %s669 = sld [smem:[#allocation12 + $0x30f]]
    %v670 = vstv %s669
    %v671 = vmul.f32 %v608, %v670
    %v672 = vadd.f32 %v597, %v671
    %s673 = sld [smem:[#allocation9 + $0x7]]
    %v674 = vstv %s673
    %v675 = vmul.f32 %v114, %v674
    %s676 = sld [smem:[#allocation9 + $0x87]]
    %v677 = vstv %s676
    %v678 = vmul.f32 %v115, %v677
    %v679 = vadd.f32 %v675, %v678
    %s680 = sld [smem:[#allocation10 + $0x7]]
    %v681 = vstv %s680
    %v682 = vadd.f32 %v679, %v681
    %v683 = vtanh.pop %v682
    %s684 = sld [smem:[#allocation12 + $0x380]]
    %v685 = vstv %s684
    %v686 = vmul.f32 %v683, %v685
    %v687 = vadd.f32 %v612, %v686
    %s688 = sld [smem:[#allocation12 + $0x381]]
    %v689 = vstv %s688
    %v690 = vmul.f32 %v683, %v689
    %v691 = vadd.f32 %v616, %v690
    %s692 = sld [smem:[#allocation12 + $0x382]]
    %v693 = vstv %s692
    %v694 = vmul.f32 %v683, %v693
    %v695 = vadd.f32 %v620, %v694
    %s696 = sld [smem:[#allocation12 + $0x383]]
    %v697 = vstv %s696
    %v698 = vmul.f32 %v683, %v697
    %v699 = vadd.f32 %v624, %v698
    %s700 = sld [smem:[#allocation12 + $0x384]]
    %v701 = vstv %s700
    %v702 = vmul.f32 %v683, %v701
    %v703 = vadd.f32 %v628, %v702
    %s704 = sld [smem:[#allocation12 + $0x385]]
    %v705 = vstv %s704
    %v706 = vmul.f32 %v683, %v705
    %v707 = vadd.f32 %v632, %v706
    %s708 = sld [smem:[#allocation12 + $0x386]]
    %v709 = vstv %s708
    %v710 = vmul.f32 %v683, %v709
    %v711 = vadd.f32 %v636, %v710
    %s712 = sld [smem:[#allocation12 + $0x387]]
    %v713 = vstv %s712
    %v714 = vmul.f32 %v683, %v713
    %v715 = vadd.f32 %v640, %v714
    %s716 = sld [smem:[#allocation12 + $0x388]]
    %v717 = vstv %s716
    %v718 = vmul.f32 %v683, %v717
    %v719 = vadd.f32 %v644, %v718
    %s720 = sld [smem:[#allocation12 + $0x389]]
    %v721 = vstv %s720
    %v722 = vmul.f32 %v683, %v721
    %v723 = vadd.f32 %v648, %v722
    %s724 = sld [smem:[#allocation12 + $0x38a]]
    %v725 = vstv %s724
    %v726 = vmul.f32 %v683, %v725
    %v727 = vadd.f32 %v652, %v726
    %s728 = sld [smem:[#allocation12 + $0x38b]]
    %v729 = vstv %s728
    %v730 = vmul.f32 %v683, %v729
    %v731 = vadd.f32 %v656, %v730
    %s732 = sld [smem:[#allocation12 + $0x38c]]
    %v733 = vstv %s732
    %v734 = vmul.f32 %v683, %v733
    %v735 = vadd.f32 %v660, %v734
    %s736 = sld [smem:[#allocation12 + $0x38d]]
    %v737 = vstv %s736
    %v738 = vmul.f32 %v683, %v737
    %v739 = vadd.f32 %v664, %v738
    %s740 = sld [smem:[#allocation12 + $0x38e]]
    %v741 = vstv %s740
    %v742 = vmul.f32 %v683, %v741
    %v743 = vadd.f32 %v668, %v742
    %s744 = sld [smem:[#allocation12 + $0x38f]]
    %v745 = vstv %s744
    %v746 = vmul.f32 %v683, %v745
    %v747 = vadd.f32 %v672, %v746
    %v748 = vmax.f32 %v687, 0.0
    %s749 = sld [smem:[#allocation15]]
    %v750 = vstv %s749
    %v751 = vmul.f32 %v748, %v750
    %v752 = vmax.f32 %v691, 0.0
    %s753 = sld [smem:[#allocation15 + $0x1]]
    %v754 = vstv %s753
    %v755 = vmul.f32 %v752, %v754
    %v756 = vadd.f32 %v751, %v755
    %v757 = vmax.f32 %v695, 0.0
    %s758 = sld [smem:[#allocation15 + $0x2]]
    %v759 = vstv %s758
    %v760 = vmul.f32 %v757, %v759
    %v761 = vadd.f32 %v756, %v760
    %v762 = vmax.f32 %v699, 0.0
    %s763 = sld [smem:[#allocation15 + $0x3]]
    %v764 = vstv %s763
    %v765 = vmul.f32 %v762, %v764
    %v766 = vadd.f32 %v761, %v765
    %v767 = vmax.f32 %v703, 0.0
    %s768 = sld [smem:[#allocation15 + $0x4]]
    %v769 = vstv %s768
    %v770 = vmul.f32 %v767, %v769
    %v771 = vadd.f32 %v766, %v770
    %v772 = vmax.f32 %v707, 0.0
    %s773 = sld [smem:[#allocation15 + $0x5]]
    %v774 = vstv %s773
    %v775 = vmul.f32 %v772, %v774
    %v776 = vadd.f32 %v771, %v775
    %v777 = vmax.f32 %v711, 0.0
    %s778 = sld [smem:[#allocation15 + $0x6]]
    %v779 = vstv %s778
    %v780 = vmul.f32 %v777, %v779
    %v781 = vadd.f32 %v776, %v780
    %v782 = vmax.f32 %v715, 0.0
    %s783 = sld [smem:[#allocation15 + $0x7]]
    %v784 = vstv %s783
    %v785 = vmul.f32 %v782, %v784
    %v786 = vadd.f32 %v781, %v785
    %v787 = vmax.f32 %v719, 0.0
    %s788 = sld [smem:[#allocation15 + $0x8]]
    %v789 = vstv %s788
    %v790 = vmul.f32 %v787, %v789
    %v791 = vadd.f32 %v786, %v790
    %v792 = vmax.f32 %v723, 0.0
    %s793 = sld [smem:[#allocation15 + $0x9]]
    %v794 = vstv %s793
    %v795 = vmul.f32 %v792, %v794
    %v796 = vadd.f32 %v791, %v795
    %v797 = vmax.f32 %v727, 0.0
    %s798 = sld [smem:[#allocation15 + $0xa]]
    %v799 = vstv %s798
    %v800 = vmul.f32 %v797, %v799
    %v801 = vadd.f32 %v796, %v800
    %v802 = vmax.f32 %v731, 0.0
    %s803 = sld [smem:[#allocation15 + $0xb]]
    %v804 = vstv %s803
    %v805 = vmul.f32 %v802, %v804
    %v806 = vadd.f32 %v801, %v805
    %v807 = vmax.f32 %v735, 0.0
    %s808 = sld [smem:[#allocation15 + $0xc]]
    %v809 = vstv %s808
    %v810 = vmul.f32 %v807, %v809
    %v811 = vadd.f32 %v806, %v810
    %v812 = vmax.f32 %v739, 0.0
    %s813 = sld [smem:[#allocation15 + $0xd]]
    %v814 = vstv %s813
    %v815 = vmul.f32 %v812, %v814
    %v816 = vadd.f32 %v811, %v815
    %v817 = vmax.f32 %v743, 0.0
    %s818 = sld [smem:[#allocation15 + $0xe]]
    %v819 = vstv %s818
    %v820 = vmul.f32 %v817, %v819
    %v821 = vadd.f32 %v816, %v820
    %v822 = vmax.f32 %v747, 0.0
    %s823 = sld [smem:[#allocation15 + $0xf]]
    %v824 = vstv %s823
    %v825 = vmul.f32 %v822, %v824
    %v826 = vadd.f32 %v821, %v825
    %s827 = sld [smem:[#allocation2]]
    %v828 = vstv %s827
    %v829 = vadd.f32 %v826, %v828
    %830 = vst [vmem:[#allocation16] sm:$0xff] %v829
    // Predicated region
    $region62: #{tpu_custom_call.1} parent=1 // pred_check
      _
    $region63: #{tpu_custom_call.1} parent=1 // pred_check_branch
      %832 = sbr.rel (0) target = $region65
    $region64: #{tpu_custom_call.1} parent=1 // pred_region
      %s834 = ssub.s32 128, 128
      %835 = vsyncadd [#allocation5], %s834
      %s837 = sshll.u32 [#allocation16], 4
      %s838 = int_to_ptr.vmem [resolvable:$true] %s837
      %840 = dma.vmem_to_hbm [thread:$0]  %s838, 128, %s8, [#allocation5]
    $region65: #{tpu_custom_call.1} parent=1 // pred_fallthru
      _
    // Predicated region
    $region66: #{tpu_custom_call.1} parent=1 // pred_check
      _
    $region67: #{tpu_custom_call.1} parent=1 // pred_check_branch
      %842 = sbr.rel (0) target = $region69
    $region68: #{tpu_custom_call.1} parent=1 // pred_region
      %843 = dma.done [#allocation5], 128
    $region69: #{tpu_custom_call.1} parent=1 // pred_fallthru
      _
    %844 = vsyncpa [#allocation4], 1
    %845 = vsyncpa [#allocation8], 1
    %846 = vsyncpa [#allocation5], 1
    %847 = vsyncpa [#allocation6], 1
    %848 = vsyncpa [#allocation11], 1
    %849 = vsyncpa [#allocation14], 1

</llo_original>
